<compile_context>
chip_gen: v7x
topology: tpu7x:2x2x1
jax: 0.10.0
libtpu: 0.0.40
codegen_flags: <defaults>
</compile_context>

<pallas_src>
import functools

import jax
import jax.numpy as jnp
from jax.experimental import pallas as pl
from jax.experimental.pallas import tpu as pltpu


def _round_up(x, m):
    return (x + m - 1) // m * m


def _dwconv_kernel(x_ref, w_ref, o_ref, xpad_ref, *, kh, kw, pad):
    """Depthwise 2D conv for one (batch, channel-block) tile.

    x_ref:    (1, Hin, Win, Cblk)        unpadded input tile (VMEM)
    w_ref:    (kh, kw, Cblk)             per-channel filters (VMEM)
    o_ref:    (1, Hout, Wout, Cblk)      output tile (VMEM)
    xpad_ref: (Hin+2p, Wp_pad, Cblk) f32 zero-halo scratch, Wp_pad = ceil8(Win+2p)
    """
    Hin, Win = x_ref.shape[1], x_ref.shape[2]
    Hout, Wout, Cblk = o_ref.shape[1], o_ref.shape[2], o_ref.shape[3]

    # Build the zero-padded tile entirely in VMEM (no wrapper-side jnp.pad of
    # the activations).  The scratch W dim is padded to a multiple of 8 so this
    # zero-fill is unmasked full-tile stores; columns >= Win+2*pad are never read.
    xpad_ref[...] = jnp.zeros_like(xpad_ref)
    xpad_ref[pad:pad + Hin, pad:pad + Win, :] = x_ref[0].astype(jnp.float32)

    # Compute per 128-lane sub-tile: keeps the f32 accumulator at ~7 vregs and
    # the row slab at ~14 vregs regardless of c_block, so no vreg spills.
    n_sub = Cblk // 128
    for cs in range(n_sub):
        csl = slice(cs * 128, (cs + 1) * 128)
        # Weight cast hoisted out of the tap loops (once per sub-tile).
        w_c = w_ref[:, :, csl].astype(jnp.float32)          # (kh, kw, 128)
        acc = jnp.zeros((Hout, Wout, 128), jnp.float32)     # register-resident
        for i in range(kh):
            # One aligned load per kernel row (outer-dim slice only) ...
            xrow = xpad_ref[i:i + Hout, :, csl]             # (Hout, Wp_pad, 128)
            for j in range(kw):
                # ... j-shifted windows are in-register slices of that value.
                xwin = xrow[:, j:j + Wout, :]               # (Hout, Wout, 128)
                acc = acc + xwin * w_c[i, j, :][None, None, :]
        o_ref[0, :, :, csl] = acc.astype(o_ref.dtype)


@functools.partial(jax.jit, static_argnames=("padding", "c_block"))
def depthwise_conv2d_pallas(x_nchw, w_torch, *, padding=2, c_block=384):
    """x_nchw: (N, C, H, W); w_torch: (C, 1, KH, KW) (PyTorch depthwise layout).

    Real module shape: N=1, C=2064, H=W=7, 5x5, stride 1, pad 2, no bias.
    c_block=384 -> 6 channel tiles (even, good for v7x megacore), 11.6% pad waste.
    """
    N, C, H, W = x_nchw.shape
    KH, KW = int(w_torch.shape[2]), int(w_torch.shape[3])
    assert w_torch.shape[0] == C and w_torch.shape[1] == 1
    assert c_block % 128 == 0, "channel block must be lane-aligned (x128)"

    H_out = H + 2 * padding - KH + 1
    W_out = W + 2 * padding - KW + 1

    # NCHW -> NHWC so channels ride the 128-wide lane axis.  Under jit the
    # transpose and the channel pad below fuse into a single HBM copy.
    x_nhwc = jnp.transpose(x_nchw, (0, 2, 3, 1))
    w_khwc = jnp.transpose(w_torch[:, 0, :, :], (1, 2, 0))      # (KH, KW, C)

    num_cb = pl.cdiv(C, c_block)
    c_pad = num_cb * c_block
    if c_pad != C:
        # Zero channels produce zero outputs and are sliced off afterwards.
        x_nhwc = jnp.pad(x_nhwc, ((0, 0), (0, 0), (0, 0), (0, c_pad - C)))
        w_khwc = jnp.pad(w_khwc, ((0, 0), (0, 0), (0, c_pad - C)))

    Hp = H + 2 * padding
    Wp_pad = _round_up(W + 2 * padding, 8)   # sublane-aligned halo scratch width

    kernel = functools.partial(_dwconv_kernel, kh=KH, kw=KW, pad=padding)

    out_nhwc = pl.pallas_call(
        kernel,
        out_shape=jax.ShapeDtypeStruct((N, H_out, W_out, c_pad), x_nchw.dtype),
        grid_spec=pltpu.PrefetchScalarGridSpec(
            num_scalar_prefetch=0,
            grid=(N, num_cb),
            in_specs=[
                pl.BlockSpec((1, H, W, c_block), lambda n, c: (n, 0, 0, c)),
                pl.BlockSpec((KH, KW, c_block), lambda n, c: (0, 0, c)),
            ],
            out_specs=pl.BlockSpec((1, H_out, W_out, c_block),
                                   lambda n, c: (n, 0, 0, c)),
            scratch_shapes=[pltpu.VMEM((Hp, Wp_pad, c_block), jnp.float32)],
        ),
        compiler_params=pltpu.CompilerParams(
            dimension_semantics=("parallel", "parallel")),
    )(x_nhwc, w_khwc)

    if c_pad != C:
        out_nhwc = out_nhwc[..., :C]
    # Back to the PyTorch NCHW convention (fuses with the consumer under jit).
    return jnp.transpose(out_nhwc, (0, 3, 1, 2))


if __name__ == "__main__":
    # Small shapes consistent with the module (real: N=1, C=2064, H=W=7,
    # depthwise 5x5, stride 1, pad 2).  C is intentionally NOT a multiple of the
    # channel block (exercises the channel-padding path); N=2 exercises the
    # batch grid axis.
    N, C, H, W = 2, 320, 7, 7
    KH, KW = 5, 5

    key = jax.random.PRNGKey(0)
    kx, kk = jax.random.split(key)
    x = jax.random.normal(kx, (N, C, H, W), dtype=jnp.float32)
    # PyTorch depthwise weight shape: (C_out=C, C_in/groups=1, KH, KW)
    w = jax.random.normal(kk, (C, 1, KH, KW), dtype=jnp.float32) * 0.1

    # Pure-JAX reference: XLA grouped convolution.
    ref = jax.lax.conv_general_dilated(
        x, w, window_strides=(1, 1), padding=((2, 2), (2, 2)),
        dimension_numbers=("NCHW", "OIHW", "NCHW"),
        feature_group_count=C)

    # c_block=128 exercises multiple channel tiles; c_block=384 is the
    # production default (single sub-tiled block at this small C).
    for cb in (128, 384):
        out = depthwise_conv2d_pallas(x, w, padding=2, c_block=cb)
        out = jax.block_until_ready(out)
        assert out.shape == ref.shape == (N, C, H, W)
        assert jnp.allclose(out, ref, atol=1e-4, rtol=1e-4), \
            f"mismatch vs reference (c_block={cb})"

    print("KERNEL_OK")
</pallas_src>

<mosaic_0001>
module attributes {stable_mosaic.version = 11 : i64} {
  func.func @_dwconv_kernel(%arg0: i32, %arg1: i32, %arg2: memref<1x7x7x128xf32, #tpu.memory_space<vmem>>, %arg3: memref<5x5x128xf32, #tpu.memory_space<vmem>>, %arg4: memref<1x7x7x128xf32, #tpu.memory_space<vmem>>, %arg5: memref<11x16x128xf32, #tpu.memory_space<vmem>>) attributes {dimension_semantics = [#tpu.dimension_semantics<parallel>, #tpu.dimension_semantics<parallel>], iteration_bounds = array<i64: 2, 3>, scalar_prefetch = 0 : i64, scratch_operands = 1 : i64, tpu.core_type = #tpu.core_type<tc>, window_params = [{transform_indices = @transform_0, window_bounds = array<i64: 1, 7, 7, 128>}, {transform_indices = @transform_1, window_bounds = array<i64: 5, 5, 128>}, {transform_indices = @transform_2, window_bounds = array<i64: 1, 7, 7, 128>}]} {
    %cst = arith.constant 0.000000e+00 : f32
    %0 = vector.broadcast %cst : f32 to vector<11x16x128xf32>
    %c0 = arith.constant 0 : index
    %c0_0 = arith.constant 0 : index
    %c0_1 = arith.constant 0 : index
    %1 = vector.load %arg5[%c0, %c0_0, %c0_1] : memref<11x16x128xf32, #tpu.memory_space<vmem>>, vector<11x16x128xf32>
    tpu.vector_store %arg5[%c0, %c0_0, %c0_1], %0 {strides = array<i32>} : memref<11x16x128xf32, #tpu.memory_space<vmem>>, vector<11x16x128xf32>,
    %c0_2 = arith.constant 0 : index
    %c0_3 = arith.constant 0 : index
    %c0_4 = arith.constant 0 : index
    %c0_5 = arith.constant 0 : index
    %2 = vector.load %arg2[%c0_2, %c0_3, %c0_4, %c0_5] : memref<1x7x7x128xf32, #tpu.memory_space<vmem>>, vector<1x7x7x128xf32>
    %3 = vector.shape_cast %2 : vector<1x7x7x128xf32> to vector<7x7x128xf32>
    %c2 = arith.constant 2 : index
    %c2_6 = arith.constant 2 : index
    %c0_7 = arith.constant 0 : index
    %4 = vector.load %arg5[%c2, %c2_6, %c0_7] : memref<11x16x128xf32, #tpu.memory_space<vmem>>, vector<7x7x128xf32>
    tpu.vector_store %arg5[%c2, %c2_6, %c0_7], %3 {strides = array<i32>} : memref<11x16x128xf32, #tpu.memory_space<vmem>>, vector<7x7x128xf32>,
    %c0_8 = arith.constant 0 : index
    %c0_9 = arith.constant 0 : index
    %c0_10 = arith.constant 0 : index
    %5 = vector.load %arg3[%c0_8, %c0_9, %c0_10] : memref<5x5x128xf32, #tpu.memory_space<vmem>>, vector<5x5x128xf32>
    %cst_11 = arith.constant 0.000000e+00 : f32
    %6 = vector.broadcast %cst_11 : f32 to vector<7x7x128xf32>
    %c0_12 = arith.constant 0 : index
    %c0_13 = arith.constant 0 : index
    %c0_14 = arith.constant 0 : index
    %7 = vector.load %arg5[%c0_12, %c0_13, %c0_14] : memref<11x16x128xf32, #tpu.memory_space<vmem>>, vector<7x16x128xf32>
    %8 = vector.extract_strided_slice %7 {offsets = [0, 0, 0], sizes = [7, 7, 128], strides = [1, 1, 1]} : vector<7x16x128xf32> to vector<7x7x128xf32>
    %9 = vector.extract_strided_slice %5 {offsets = [0, 0, 0], sizes = [1, 1, 128], strides = [1, 1, 1]} : vector<5x5x128xf32> to vector<1x1x128xf32>
    %10 = vector.shape_cast %9 : vector<1x1x128xf32> to vector<128xf32>
    %11 = vector.shape_cast %10 : vector<128xf32> to vector<1x1x128xf32>
    %12 = vector.broadcast %11 : vector<1x1x128xf32> to vector<7x7x128xf32>
    %13 = arith.mulf %8, %12 : vector<7x7x128xf32>
    %14 = arith.addf %6, %13 : vector<7x7x128xf32>
    %15 = vector.extract_strided_slice %7 {offsets = [0, 1, 0], sizes = [7, 7, 128], strides = [1, 1, 1]} : vector<7x16x128xf32> to vector<7x7x128xf32>
    %16 = vector.extract_strided_slice %5 {offsets = [0, 1, 0], sizes = [1, 1, 128], strides = [1, 1, 1]} : vector<5x5x128xf32> to vector<1x1x128xf32>
    %17 = vector.shape_cast %16 : vector<1x1x128xf32> to vector<128xf32>
    %18 = vector.shape_cast %17 : vector<128xf32> to vector<1x1x128xf32>
    %19 = vector.broadcast %18 : vector<1x1x128xf32> to vector<7x7x128xf32>
    %20 = arith.mulf %15, %19 : vector<7x7x128xf32>
    %21 = arith.addf %14, %20 : vector<7x7x128xf32>
    %22 = vector.extract_strided_slice %7 {offsets = [0, 2, 0], sizes = [7, 7, 128], strides = [1, 1, 1]} : vector<7x16x128xf32> to vector<7x7x128xf32>
    %23 = vector.extract_strided_slice %5 {offsets = [0, 2, 0], sizes = [1, 1, 128], strides = [1, 1, 1]} : vector<5x5x128xf32> to vector<1x1x128xf32>
    %24 = vector.shape_cast %23 : vector<1x1x128xf32> to vector<128xf32>
    %25 = vector.shape_cast %24 : vector<128xf32> to vector<1x1x128xf32>
    %26 = vector.broadcast %25 : vector<1x1x128xf32> to vector<7x7x128xf32>
    %27 = arith.mulf %22, %26 : vector<7x7x128xf32>
    %28 = arith.addf %21, %27 : vector<7x7x128xf32>
    %29 = vector.extract_strided_slice %7 {offsets = [0, 3, 0], sizes = [7, 7, 128], strides = [1, 1, 1]} : vector<7x16x128xf32> to vector<7x7x128xf32>
    %30 = vector.extract_strided_slice %5 {offsets = [0, 3, 0], sizes = [1, 1, 128], strides = [1, 1, 1]} : vector<5x5x128xf32> to vector<1x1x128xf32>
    %31 = vector.shape_cast %30 : vector<1x1x128xf32> to vector<128xf32>
    %32 = vector.shape_cast %31 : vector<128xf32> to vector<1x1x128xf32>
    %33 = vector.broadcast %32 : vector<1x1x128xf32> to vector<7x7x128xf32>
    %34 = arith.mulf %29, %33 : vector<7x7x128xf32>
    %35 = arith.addf %28, %34 : vector<7x7x128xf32>
    %36 = vector.extract_strided_slice %7 {offsets = [0, 4, 0], sizes = [7, 7, 128], strides = [1, 1, 1]} : vector<7x16x128xf32> to vector<7x7x128xf32>
    %37 = vector.extract_strided_slice %5 {offsets = [0, 4, 0], sizes = [1, 1, 128], strides = [1, 1, 1]} : vector<5x5x128xf32> to vector<1x1x128xf32>
    %38 = vector.shape_cast %37 : vector<1x1x128xf32> to vector<128xf32>
    %39 = vector.shape_cast %38 : vector<128xf32> to vector<1x1x128xf32>
    %40 = vector.broadcast %39 : vector<1x1x128xf32> to vector<7x7x128xf32>
    %41 = arith.mulf %36, %40 : vector<7x7x128xf32>
    %42 = arith.addf %35, %41 : vector<7x7x128xf32>
    %c1 = arith.constant 1 : index
    %c0_15 = arith.constant 0 : index
    %c0_16 = arith.constant 0 : index
    %43 = vector.load %arg5[%c1, %c0_15, %c0_16] : memref<11x16x128xf32, #tpu.memory_space<vmem>>, vector<7x16x128xf32>
    %44 = vector.extract_strided_slice %43 {offsets = [0, 0, 0], sizes = [7, 7, 128], strides = [1, 1, 1]} : vector<7x16x128xf32> to vector<7x7x128xf32>
    %45 = vector.extract_strided_slice %5 {offsets = [1, 0, 0], sizes = [1, 1, 128], strides = [1, 1, 1]} : vector<5x5x128xf32> to vector<1x1x128xf32>
    %46 = vector.shape_cast %45 : vector<1x1x128xf32> to vector<128xf32>
    %47 = vector.shape_cast %46 : vector<128xf32> to vector<1x1x128xf32>
    %48 = vector.broadcast %47 : vector<1x1x128xf32> to vector<7x7x128xf32>
    %49 = arith.mulf %44, %48 : vector<7x7x128xf32>
    %50 = arith.addf %42, %49 : vector<7x7x128xf32>
    %51 = vector.extract_strided_slice %43 {offsets = [0, 1, 0], sizes = [7, 7, 128], strides = [1, 1, 1]} : vector<7x16x128xf32> to vector<7x7x128xf32>
    %52 = vector.extract_strided_slice %5 {offsets = [1, 1, 0], sizes = [1, 1, 128], strides = [1, 1, 1]} : vector<5x5x128xf32> to vector<1x1x128xf32>
    %53 = vector.shape_cast %52 : vector<1x1x128xf32> to vector<128xf32>
    %54 = vector.shape_cast %53 : vector<128xf32> to vector<1x1x128xf32>
    %55 = vector.broadcast %54 : vector<1x1x128xf32> to vector<7x7x128xf32>
    %56 = arith.mulf %51, %55 : vector<7x7x128xf32>
    %57 = arith.addf %50, %56 : vector<7x7x128xf32>
    %58 = vector.extract_strided_slice %43 {offsets = [0, 2, 0], sizes = [7, 7, 128], strides = [1, 1, 1]} : vector<7x16x128xf32> to vector<7x7x128xf32>
    %59 = vector.extract_strided_slice %5 {offsets = [1, 2, 0], sizes = [1, 1, 128], strides = [1, 1, 1]} : vector<5x5x128xf32> to vector<1x1x128xf32>
    %60 = vector.shape_cast %59 : vector<1x1x128xf32> to vector<128xf32>
    %61 = vector.shape_cast %60 : vector<128xf32> to vector<1x1x128xf32>
    %62 = vector.broadcast %61 : vector<1x1x128xf32> to vector<7x7x128xf32>
    %63 = arith.mulf %58, %62 : vector<7x7x128xf32>
    %64 = arith.addf %57, %63 : vector<7x7x128xf32>
    %65 = vector.extract_strided_slice %43 {offsets = [0, 3, 0], sizes = [7, 7, 128], strides = [1, 1, 1]} : vector<7x16x128xf32> to vector<7x7x128xf32>
    %66 = vector.extract_strided_slice %5 {offsets = [1, 3, 0], sizes = [1, 1, 128], strides = [1, 1, 1]} : vector<5x5x128xf32> to vector<1x1x128xf32>
    %67 = vector.shape_cast %66 : vector<1x1x128xf32> to vector<128xf32>
    %68 = vector.shape_cast %67 : vector<128xf32> to vector<1x1x128xf32>
    %69 = vector.broadcast %68 : vector<1x1x128xf32> to vector<7x7x128xf32>
    %70 = arith.mulf %65, %69 : vector<7x7x128xf32>
    %71 = arith.addf %64, %70 : vector<7x7x128xf32>
    %72 = vector.extract_strided_slice %43 {offsets = [0, 4, 0], sizes = [7, 7, 128], strides = [1, 1, 1]} : vector<7x16x128xf32> to vector<7x7x128xf32>
    %73 = vector.extract_strided_slice %5 {offsets = [1, 4, 0], sizes = [1, 1, 128], strides = [1, 1, 1]} : vector<5x5x128xf32> to vector<1x1x128xf32>
    %74 = vector.shape_cast %73 : vector<1x1x128xf32> to vector<128xf32>
    %75 = vector.shape_cast %74 : vector<128xf32> to vector<1x1x128xf32>
    %76 = vector.broadcast %75 : vector<1x1x128xf32> to vector<7x7x128xf32>
    %77 = arith.mulf %72, %76 : vector<7x7x128xf32>
    %78 = arith.addf %71, %77 : vector<7x7x128xf32>
    %c2_17 = arith.constant 2 : index
    %c0_18 = arith.constant 0 : index
    %c0_19 = arith.constant 0 : index
    %79 = vector.load %arg5[%c2_17, %c0_18, %c0_19] : memref<11x16x128xf32, #tpu.memory_space<vmem>>, vector<7x16x128xf32>
    %80 = vector.extract_strided_slice %79 {offsets = [0, 0, 0], sizes = [7, 7, 128], strides = [1, 1, 1]} : vector<7x16x128xf32> to vector<7x7x128xf32>
    %81 = vector.extract_strided_slice %5 {offsets = [2, 0, 0], sizes = [1, 1, 128], strides = [1, 1, 1]} : vector<5x5x128xf32> to vector<1x1x128xf32>
    %82 = vector.shape_cast %81 : vector<1x1x128xf32> to vector<128xf32>
    %83 = vector.shape_cast %82 : vector<128xf32> to vector<1x1x128xf32>
    %84 = vector.broadcast %83 : vector<1x1x128xf32> to vector<7x7x128xf32>
    %85 = arith.mulf %80, %84 : vector<7x7x128xf32>
    %86 = arith.addf %78, %85 : vector<7x7x128xf32>
    %87 = vector.extract_strided_slice %79 {offsets = [0, 1, 0], sizes = [7, 7, 128], strides = [1, 1, 1]} : vector<7x16x128xf32> to vector<7x7x128xf32>
    %88 = vector.extract_strided_slice %5 {offsets = [2, 1, 0], sizes = [1, 1, 128], strides = [1, 1, 1]} : vector<5x5x128xf32> to vector<1x1x128xf32>
    %89 = vector.shape_cast %88 : vector<1x1x128xf32> to vector<128xf32>
    %90 = vector.shape_cast %89 : vector<128xf32> to vector<1x1x128xf32>
    %91 = vector.broadcast %90 : vector<1x1x128xf32> to vector<7x7x128xf32>
    %92 = arith.mulf %87, %91 : vector<7x7x128xf32>
    %93 = arith.addf %86, %92 : vector<7x7x128xf32>
    %94 = vector.extract_strided_slice %79 {offsets = [0, 2, 0], sizes = [7, 7, 128], strides = [1, 1, 1]} : vector<7x16x128xf32> to vector<7x7x128xf32>
    %95 = vector.extract_strided_slice %5 {offsets = [2, 2, 0], sizes = [1, 1, 128], strides = [1, 1, 1]} : vector<5x5x128xf32> to vector<1x1x128xf32>
    %96 = vector.shape_cast %95 : vector<1x1x128xf32> to vector<128xf32>
    %97 = vector.shape_cast %96 : vector<128xf32> to vector<1x1x128xf32>
    %98 = vector.broadcast %97 : vector<1x1x128xf32> to vector<7x7x128xf32>
    %99 = arith.mulf %94, %98 : vector<7x7x128xf32>
    %100 = arith.addf %93, %99 : vector<7x7x128xf32>
    %101 = vector.extract_strided_slice %79 {offsets = [0, 3, 0], sizes = [7, 7, 128], strides = [1, 1, 1]} : vector<7x16x128xf32> to vector<7x7x128xf32>
    %102 = vector.extract_strided_slice %5 {offsets = [2, 3, 0], sizes = [1, 1, 128], strides = [1, 1, 1]} : vector<5x5x128xf32> to vector<1x1x128xf32>
    %103 = vector.shape_cast %102 : vector<1x1x128xf32> to vector<128xf32>
    %104 = vector.shape_cast %103 : vector<128xf32> to vector<1x1x128xf32>
    %105 = vector.broadcast %104 : vector<1x1x128xf32> to vector<7x7x128xf32>
    %106 = arith.mulf %101, %105 : vector<7x7x128xf32>
    %107 = arith.addf %100, %106 : vector<7x7x128xf32>
    %108 = vector.extract_strided_slice %79 {offsets = [0, 4, 0], sizes = [7, 7, 128], strides = [1, 1, 1]} : vector<7x16x128xf32> to vector<7x7x128xf32>
    %109 = vector.extract_strided_slice %5 {offsets = [2, 4, 0], sizes = [1, 1, 128], strides = [1, 1, 1]} : vector<5x5x128xf32> to vector<1x1x128xf32>
    %110 = vector.shape_cast %109 : vector<1x1x128xf32> to vector<128xf32>
    %111 = vector.shape_cast %110 : vector<128xf32> to vector<1x1x128xf32>
    %112 = vector.broadcast %111 : vector<1x1x128xf32> to vector<7x7x128xf32>
    %113 = arith.mulf %108, %112 : vector<7x7x128xf32>
    %114 = arith.addf %107, %113 : vector<7x7x128xf32>
    %c3 = arith.constant 3 : index
    %c0_20 = arith.constant 0 : index
    %c0_21 = arith.constant 0 : index
    %115 = vector.load %arg5[%c3, %c0_20, %c0_21] : memref<11x16x128xf32, #tpu.memory_space<vmem>>, vector<7x16x128xf32>
    %116 = vector.extract_strided_slice %115 {offsets = [0, 0, 0], sizes = [7, 7, 128], strides = [1, 1, 1]} : vector<7x16x128xf32> to vector<7x7x128xf32>
    %117 = vector.extract_strided_slice %5 {offsets = [3, 0, 0], sizes = [1, 1, 128], strides = [1, 1, 1]} : vector<5x5x128xf32> to vector<1x1x128xf32>
    %118 = vector.shape_cast %117 : vector<1x1x128xf32> to vector<128xf32>
    %119 = vector.shape_cast %118 : vector<128xf32> to vector<1x1x128xf32>
    %120 = vector.broadcast %119 : vector<1x1x128xf32> to vector<7x7x128xf32>
    %121 = arith.mulf %116, %120 : vector<7x7x128xf32>
    %122 = arith.addf %114, %121 : vector<7x7x128xf32>
    %123 = vector.extract_strided_slice %115 {offsets = [0, 1, 0], sizes = [7, 7, 128], strides = [1, 1, 1]} : vector<7x16x128xf32> to vector<7x7x128xf32>
    %124 = vector.extract_strided_slice %5 {offsets = [3, 1, 0], sizes = [1, 1, 128], strides = [1, 1, 1]} : vector<5x5x128xf32> to vector<1x1x128xf32>
    %125 = vector.shape_cast %124 : vector<1x1x128xf32> to vector<128xf32>
    %126 = vector.shape_cast %125 : vector<128xf32> to vector<1x1x128xf32>
    %127 = vector.broadcast %126 : vector<1x1x128xf32> to vector<7x7x128xf32>
    %128 = arith.mulf %123, %127 : vector<7x7x128xf32>
    %129 = arith.addf %122, %128 : vector<7x7x128xf32>
    %130 = vector.extract_strided_slice %115 {offsets = [0, 2, 0], sizes = [7, 7, 128], strides = [1, 1, 1]} : vector<7x16x128xf32> to vector<7x7x128xf32>
    %131 = vector.extract_strided_slice %5 {offsets = [3, 2, 0], sizes = [1, 1, 128], strides = [1, 1, 1]} : vector<5x5x128xf32> to vector<1x1x128xf32>
    %132 = vector.shape_cast %131 : vector<1x1x128xf32> to vector<128xf32>
    %133 = vector.shape_cast %132 : vector<128xf32> to vector<1x1x128xf32>
    %134 = vector.broadcast %133 : vector<1x1x128xf32> to vector<7x7x128xf32>
    %135 = arith.mulf %130, %134 : vector<7x7x128xf32>
    %136 = arith.addf %129, %135 : vector<7x7x128xf32>
    %137 = vector.extract_strided_slice %115 {offsets = [0, 3, 0], sizes = [7, 7, 128], strides = [1, 1, 1]} : vector<7x16x128xf32> to vector<7x7x128xf32>
    %138 = vector.extract_strided_slice %5 {offsets = [3, 3, 0], sizes = [1, 1, 128], strides = [1, 1, 1]} : vector<5x5x128xf32> to vector<1x1x128xf32>
    %139 = vector.shape_cast %138 : vector<1x1x128xf32> to vector<128xf32>
    %140 = vector.shape_cast %139 : vector<128xf32> to vector<1x1x128xf32>
    %141 = vector.broadcast %140 : vector<1x1x128xf32> to vector<7x7x128xf32>
    %142 = arith.mulf %137, %141 : vector<7x7x128xf32>
    %143 = arith.addf %136, %142 : vector<7x7x128xf32>
    %144 = vector.extract_strided_slice %115 {offsets = [0, 4, 0], sizes = [7, 7, 128], strides = [1, 1, 1]} : vector<7x16x128xf32> to vector<7x7x128xf32>
    %145 = vector.extract_strided_slice %5 {offsets = [3, 4, 0], sizes = [1, 1, 128], strides = [1, 1, 1]} : vector<5x5x128xf32> to vector<1x1x128xf32>
    %146 = vector.shape_cast %145 : vector<1x1x128xf32> to vector<128xf32>
    %147 = vector.shape_cast %146 : vector<128xf32> to vector<1x1x128xf32>
    %148 = vector.broadcast %147 : vector<1x1x128xf32> to vector<7x7x128xf32>
    %149 = arith.mulf %144, %148 : vector<7x7x128xf32>
    %150 = arith.addf %143, %149 : vector<7x7x128xf32>
    %c4 = arith.constant 4 : index
    %c0_22 = arith.constant 0 : index
    %c0_23 = arith.constant 0 : index
    %151 = vector.load %arg5[%c4, %c0_22, %c0_23] : memref<11x16x128xf32, #tpu.memory_space<vmem>>, vector<7x16x128xf32>
    %152 = vector.extract_strided_slice %151 {offsets = [0, 0, 0], sizes = [7, 7, 128], strides = [1, 1, 1]} : vector<7x16x128xf32> to vector<7x7x128xf32>
    %153 = vector.extract_strided_slice %5 {offsets = [4, 0, 0], sizes = [1, 1, 128], strides = [1, 1, 1]} : vector<5x5x128xf32> to vector<1x1x128xf32>
    %154 = vector.shape_cast %153 : vector<1x1x128xf32> to vector<128xf32>
    %155 = vector.shape_cast %154 : vector<128xf32> to vector<1x1x128xf32>
    %156 = vector.broadcast %155 : vector<1x1x128xf32> to vector<7x7x128xf32>
    %157 = arith.mulf %152, %156 : vector<7x7x128xf32>
    %158 = arith.addf %150, %157 : vector<7x7x128xf32>
    %159 = vector.extract_strided_slice %151 {offsets = [0, 1, 0], sizes = [7, 7, 128], strides = [1, 1, 1]} : vector<7x16x128xf32> to vector<7x7x128xf32>
    %160 = vector.extract_strided_slice %5 {offsets = [4, 1, 0], sizes = [1, 1, 128], strides = [1, 1, 1]} : vector<5x5x128xf32> to vector<1x1x128xf32>
    %161 = vector.shape_cast %160 : vector<1x1x128xf32> to vector<128xf32>
    %162 = vector.shape_cast %161 : vector<128xf32> to vector<1x1x128xf32>
    %163 = vector.broadcast %162 : vector<1x1x128xf32> to vector<7x7x128xf32>
    %164 = arith.mulf %159, %163 : vector<7x7x128xf32>
    %165 = arith.addf %158, %164 : vector<7x7x128xf32>
    %166 = vector.extract_strided_slice %151 {offsets = [0, 2, 0], sizes = [7, 7, 128], strides = [1, 1, 1]} : vector<7x16x128xf32> to vector<7x7x128xf32>
    %167 = vector.extract_strided_slice %5 {offsets = [4, 2, 0], sizes = [1, 1, 128], strides = [1, 1, 1]} : vector<5x5x128xf32> to vector<1x1x128xf32>
    %168 = vector.shape_cast %167 : vector<1x1x128xf32> to vector<128xf32>
    %169 = vector.shape_cast %168 : vector<128xf32> to vector<1x1x128xf32>
    %170 = vector.broadcast %169 : vector<1x1x128xf32> to vector<7x7x128xf32>
    %171 = arith.mulf %166, %170 : vector<7x7x128xf32>
    %172 = arith.addf %165, %171 : vector<7x7x128xf32>
    %173 = vector.extract_strided_slice %151 {offsets = [0, 3, 0], sizes = [7, 7, 128], strides = [1, 1, 1]} : vector<7x16x128xf32> to vector<7x7x128xf32>
    %174 = vector.extract_strided_slice %5 {offsets = [4, 3, 0], sizes = [1, 1, 128], strides = [1, 1, 1]} : vector<5x5x128xf32> to vector<1x1x128xf32>
    %175 = vector.shape_cast %174 : vector<1x1x128xf32> to vector<128xf32>
    %176 = vector.shape_cast %175 : vector<128xf32> to vector<1x1x128xf32>
    %177 = vector.broadcast %176 : vector<1x1x128xf32> to vector<7x7x128xf32>
    %178 = arith.mulf %173, %177 : vector<7x7x128xf32>
    %179 = arith.addf %172, %178 : vector<7x7x128xf32>
    %180 = vector.extract_strided_slice %151 {offsets = [0, 4, 0], sizes = [7, 7, 128], strides = [1, 1, 1]} : vector<7x16x128xf32> to vector<7x7x128xf32>
    %181 = vector.extract_strided_slice %5 {offsets = [4, 4, 0], sizes = [1, 1, 128], strides = [1, 1, 1]} : vector<5x5x128xf32> to vector<1x1x128xf32>
    %182 = vector.shape_cast %181 : vector<1x1x128xf32> to vector<128xf32>
    %183 = vector.shape_cast %182 : vector<128xf32> to vector<1x1x128xf32>
    %184 = vector.broadcast %183 : vector<1x1x128xf32> to vector<7x7x128xf32>
    %185 = arith.mulf %180, %184 : vector<7x7x128xf32>
    %186 = arith.addf %179, %185 : vector<7x7x128xf32>
    %c0_24 = arith.constant 0 : index
    %c0_25 = arith.constant 0 : index
    %c0_26 = arith.constant 0 : index
    %c0_27 = arith.constant 0 : index
    %187 = vector.load %arg4[%c0_24, %c0_25, %c0_26, %c0_27] : memref<1x7x7x128xf32, #tpu.memory_space<vmem>>, vector<1x7x7x128xf32>
    %188 = vector.shape_cast %187 : vector<1x7x7x128xf32> to vector<7x7x128xf32>
    %189 = vector.shape_cast %186 : vector<7x7x128xf32> to vector<1x7x7x128xf32>
    tpu.vector_store %arg4[%c0_24, %c0_25, %c0_26, %c0_27], %189 {strides = array<i32>} : memref<1x7x7x128xf32, #tpu.memory_space<vmem>>, vector<1x7x7x128xf32>,
    return
  }
  func.func @transform_0(%arg0: i32, %arg1: i32) -> (i32, i32, i32, i32) {
    %c0_i32 = arith.constant 0 : i32
    %c0_i32_0 = arith.constant 0 : i32
    %c0_i32_1 = arith.constant 0 : i32
    return %arg0, %c0_i32, %c0_i32_0, %arg1 : i32, i32, i32, i32
  }
  func.func @transform_1(%arg0: i32, %arg1: i32) -> (i32, i32, i32) {
    %c0_i32 = arith.constant 0 : i32
    %c0_i32_0 = arith.constant 0 : i32
    %c0_i32_1 = arith.constant 0 : i32
    return %c0_i32, %c0_i32_0, %arg1 : i32, i32, i32
  }
  func.func @transform_2(%arg0: i32, %arg1: i32) -> (i32, i32, i32, i32) {
    %c0_i32 = arith.constant 0 : i32
    %c0_i32_0 = arith.constant 0 : i32
    %c0_i32_1 = arith.constant 0 : i32
    return %arg0, %c0_i32, %c0_i32_0, %arg1 : i32, i32, i32, i32
  }
}

</mosaic_0001>

<llo_original>
// kernel: depthwise_conv2d_pallas.1
$region0: #{depthwise_conv2d_pallas.1}
  #allocation0 [shape = 'u32[]', space=smem, size = 0x4, offset = 0x4, fixed_abs, tag = 'smem constant byte address 0x4 - core index']
  #allocation1 [shape = 'u32[144,128]{1,0:T(1,128)}', space=vmem, size = 0x12000, scoped, tag = 'internal scratch']
  #allocation2 [shape = 'f32[11,16,128]{2,1,0:T(8,128)}', space=vmem, size = 0x16000, scoped, tag = 'scratch operand']
  %s0 = inlined_call_operand.vmem [shape: f32[2,7,7,384], index: 0, kind: input, shape index: {}]
  %s1 = inlined_call_operand.vmem [shape: f32[5,5,384], index: 1, kind: input, shape index: {}]
  %s2 = inlined_call_operand.vmem [shape: f32[2,7,7,384], index: 2, kind: output, shape index: {}]
  %s3 = sld [smem:[#allocation0]]
  $region151: #{depthwise_conv2d_pallas.1} parent=0
    _
  %s5 = ssub.s32 1, %s3
  %s6 = scalar_select 0, %s5, %s3
  $region1: #{depthwise_conv2d_pallas.1} parent=0
    #allocation3 [shape = 'u8[57344]{0}', space=vmem, size = 0xe000, scoped, tag = 'input window, operand 0']
    #allocation4 [shape = 'u8[40960]{0}', space=vmem, size = 0xa000, scoped, tag = 'input window, operand 1']
    #allocation5 [shape = 'u8[57344]{0}', space=vmem, size = 0xe000, scoped, tag = 'output window, operand 0']
    loop: start=0, step=1, limit=8
    $region2: #{depthwise_conv2d_pallas.1} parent=1 // loop_pre_header
      _
    $region3: #{depthwise_conv2d_pallas.1} parent=1 // loop_header
      %s8 = sphi 0, %s12
      %p9 = scmp.ge.s32.totalorder %s8, 8
      %s15 = sphi 0, %s27
      %s16 = sphi 0, %s23
      %s17 = sphi 0, %s15
      %s18 = sphi 0, %s16
      %s19 = sphi 0, %s17
      %s20 = sphi 0, %s18
      %s32 = sphi 0, %s34
      %s35 = sphi 0, %s32
      %s36 = sphi 0, %s35
      %s52 = sphi 0, %s36
      %s58 = sphi 0, %s60
      %s61 = sphi 0, %s58
      %s62 = sphi 0, %s61
      %s78 = sphi 0, %s62
      %s86 = sphi 0, %s88
      %s89 = sphi 0, %s86
      %s90 = sphi 0, %s89
      %s106 = sphi 0, %s90
    $region4: #{depthwise_conv2d_pallas.1} parent=1 // loop_header_branch
      %11 = sbr.rel (%p9) target = $region8
    $region5: #{depthwise_conv2d_pallas.1} parent=1 // loop_body
      %s13 = ssub.s32 %s8, 1
      %s14 = ssub.s32 %s8, 2
      %s21 = sadd.s32 1, %s16
      %p22 = scmp.ge.s32.totalorder %s21, 3
      %s23 = scalar_select %p22, 0, %s21
      %s24 = sadd.s32 1, %s15
      %s25 = scalar_select %p22, %s24, %s15
      %p26 = scmp.ge.s32.totalorder %s25, 2
      %s27 = scalar_select %p26, 0, %s25
      %s28 = ssub.s32 %s15, %s27
      %s29 = ssub.s32 %s16, %s23
      %s30 = sor.u32 %s28, %s29
      %p31 = scmp.eq.s32.totalorder %s30, 0
      %s33 = sadd.s32 %s32, 1
      %s34 = scalar_select %p31, %s32, %s33
      %p37 = pneg %p31
      %p38 = scmp.eq.s32.totalorder %s8, 5
      %p39 = por %p37, %p38
      %p40 = scmp.ne.s32.totalorder %s32, %s35
      %p41 = scmp.eq.s32.totalorder %s8, 0
      %p42 = por %p40, %p41
      %p43 = scmp.ne.s32.totalorder %s32, %s35
      %p44 = scmp.eq.s32.totalorder %s13, 5
      %p45 = por %p43, %p44
      %p46 = scmp.ne.s32.totalorder %s35, %s36
      %p47 = scmp.eq.s32.totalorder %s13, 0
      %p48 = por %p46, %p47
      %p49 = scmp.ne.s32.totalorder %s35, %s36
      %p50 = scmp.eq.s32.totalorder %s14, 5
      %p51 = por %p49, %p50
      %p53 = scmp.ne.s32.totalorder %s36, %s52
      %p54 = scmp.eq.s32.totalorder %s14, 0
      %p55 = por %p53, %p54
      %s56 = ssub.s32 %s16, %s23
      %p57 = scmp.eq.s32.totalorder %s56, 0
      %s59 = sadd.s32 %s58, 1
      %s60 = scalar_select %p57, %s58, %s59
      %p63 = pneg %p57
      %p64 = scmp.eq.s32.totalorder %s8, 5
      %p65 = por %p63, %p64
      %p66 = scmp.ne.s32.totalorder %s58, %s61
      %p67 = scmp.eq.s32.totalorder %s8, 0
      %p68 = por %p66, %p67
      %p69 = scmp.ne.s32.totalorder %s58, %s61
      %p70 = scmp.eq.s32.totalorder %s13, 5
      %p71 = por %p69, %p70
      %p72 = scmp.ne.s32.totalorder %s61, %s62
      %p73 = scmp.eq.s32.totalorder %s13, 0
      %p74 = por %p72, %p73
      %p75 = scmp.ne.s32.totalorder %s61, %s62
      %p76 = scmp.eq.s32.totalorder %s14, 5
      %p77 = por %p75, %p76
      %p79 = scmp.ne.s32.totalorder %s62, %s78
      %p80 = scmp.eq.s32.totalorder %s14, 0
      %p81 = por %p79, %p80
      %s82 = ssub.s32 %s15, %s27
      %s83 = ssub.s32 %s16, %s23
      %s84 = sor.u32 %s82, %s83
      %p85 = scmp.eq.s32.totalorder %s84, 0
      %s87 = sadd.s32 %s86, 1
      %s88 = scalar_select %p85, %s86, %s87
      %p91 = pneg %p85
      %p92 = scmp.eq.s32.totalorder %s8, 5
      %p93 = por %p91, %p92
      %p94 = scmp.ne.s32.totalorder %s86, %s89
      %p95 = scmp.eq.s32.totalorder %s8, 0
      %p96 = por %p94, %p95
      %p97 = scmp.ne.s32.totalorder %s86, %s89
      %p98 = scmp.eq.s32.totalorder %s13, 5
      %p99 = por %p97, %p98
      %p100 = scmp.ne.s32.totalorder %s89, %s90
      %p101 = scmp.eq.s32.totalorder %s13, 0
      %p102 = por %p100, %p101
      %p103 = scmp.ne.s32.totalorder %s89, %s90
      %p104 = scmp.eq.s32.totalorder %s14, 5
      %p105 = por %p103, %p104
      %p107 = scmp.ne.s32.totalorder %s90, %s106
      %p108 = scmp.eq.s32.totalorder %s14, 0
      %p109 = por %p107, %p108
      %p110 = scmp.le.s32.totalorder 1, %s8
      %p111 = scmp.lt.s32.totalorder %s8, 7
      %p112 = pnand %p110, %p111
      %p113 = pneg %p112
      // Predicated region
      $region9: #{depthwise_conv2d_pallas.1} parent=5 // pred_check
        _
      $region10: #{depthwise_conv2d_pallas.1} parent=5 // pred_check_branch
        %115 = sbr.rel (%p112) target = $region12
      $region11: #{depthwise_conv2d_pallas.1} parent=5 // pred_region
        %s116 = ssub.s32 %s8, 1
      $region12: #{depthwise_conv2d_pallas.1} parent=5 // pred_fallthru
        _
      %p117 = scmp.lt.s32.totalorder %s8, 6
      // Predicated region
      $region13: #{depthwise_conv2d_pallas.1} parent=5 // pred_check
        %p118 = pneg %p117
      $region14: #{depthwise_conv2d_pallas.1} parent=5 // pred_check_branch
        %120 = sbr.rel (%p118) target = $region16
      $region15: #{depthwise_conv2d_pallas.1} parent=5 // pred_region
        // Predicated region
        $region17: #{depthwise_conv2d_pallas.1} parent=15 // pred_check
          %p121 = pneg %p42
        $region18: #{depthwise_conv2d_pallas.1} parent=15 // pred_check_branch
          %123 = sbr.rel (%p121) target = $region20
        $region19: #{depthwise_conv2d_pallas.1} parent=15 // pred_region
          %s124 = sand.u32 %s32, 1
          %s125 = sand.u32 %s32, 1
          %s126 = smul.addr %s125, 56
          %s127 = scalar_lea.vmem [#allocation3], %s126
          %s128 = smul.addr %s15, 21
          %s129 = sadd.s32 %s16, %s128
          %s130 = smul.addr %s129, 8
          %s131 = scalar_lea.vmem %s0, %s130
          // Predicated region
          $region21: #{depthwise_conv2d_pallas.1} parent=19 // pred_check
            _
          $region22: #{depthwise_conv2d_pallas.1} parent=19 // pred_check_branch
            %133 = sbr.rel (0) target = $region24
          $region23: #{depthwise_conv2d_pallas.1} parent=19 // pred_region
            // Predicated region
            $region25: #{depthwise_conv2d_pallas.1} parent=23 // pred_check
              _
            $region26: #{depthwise_conv2d_pallas.1} parent=23 // pred_check_branch
              %135 = sbr.rel (0) target = $region28
            $region27: #{depthwise_conv2d_pallas.1} parent=23 // pred_region
              // Predicated region
              $region40: #{depthwise_conv2d_pallas.1} parent=27 // pred_check
                _
              $region41: #{depthwise_conv2d_pallas.1} parent=27 // pred_check_branch
                %162 = sbr.rel (0) target = $region43
              $region42: #{depthwise_conv2d_pallas.1} parent=27 // pred_region
                loop: start=0, step=1, limit=1
                $region44: #{depthwise_conv2d_pallas.1} parent=42 // loop_pre_header
                  _
                $region45: #{depthwise_conv2d_pallas.1} parent=42 // loop_header
                  %s164 = sphi 0, %s168
                  %p165 = scmp.ge.s32.totalorder %s164, 1
                  %s169 = sphi %s131, %s131
                  %s170 = sphi %s127, %s127
                $region46: #{depthwise_conv2d_pallas.1} parent=42 // loop_header_branch
                  %167 = sbr.rel (%p165) target = $region50
                $region47: #{depthwise_conv2d_pallas.1} parent=42 // loop_body
                  %v171 = vld [vmem:[%s169] sm:$0xff]
                  %172 = vst [vmem:[%s170] sm:$0xff] %v171
                  %v173 = vld [vmem:[%s169 + $0x18] sm:$0xff]
                  %174 = vst [vmem:[%s170 + $0x8] sm:$0xff] %v173
                  %v175 = vld [vmem:[%s169 + $0x30] sm:$0xff]
                  %176 = vst [vmem:[%s170 + $0x10] sm:$0xff] %v175
                  %v177 = vld [vmem:[%s169 + $0x48] sm:$0xff]
                  %178 = vst [vmem:[%s170 + $0x18] sm:$0xff] %v177
                  %v179 = vld [vmem:[%s169 + $0x60] sm:$0xff]
                  %180 = vst [vmem:[%s170 + $0x20] sm:$0xff] %v179
                  %v181 = vld [vmem:[%s169 + $0x78] sm:$0xff]
                  %182 = vst [vmem:[%s170 + $0x28] sm:$0xff] %v181
                  %v183 = vld [vmem:[%s169 + $0x90] sm:$0xff]
                  %184 = vst [vmem:[%s170 + $0x30] sm:$0xff] %v183
                $region48: #{depthwise_conv2d_pallas.1} parent=42 // loop_footer
                  %s168 = sadd.s32 1, %s164
                $region49: #{depthwise_conv2d_pallas.1} parent=42 // loop_footer_branch
                  %163 = sbr.rel target = $region45
                $region50: #{depthwise_conv2d_pallas.1} parent=42 // loop_exit
                  _
              $region43: #{depthwise_conv2d_pallas.1} parent=27 // pred_fallthru
                _
              // Predicated region
              $region51: #{depthwise_conv2d_pallas.1} parent=27 // pred_check
                _
              $region52: #{depthwise_conv2d_pallas.1} parent=27 // pred_check_branch
                %186 = sbr.rel target = $region54
              $region53: #{depthwise_conv2d_pallas.1} parent=27 // pred_region
                _
              $region54: #{depthwise_conv2d_pallas.1} parent=27 // pred_fallthru
                _
            $region28: #{depthwise_conv2d_pallas.1} parent=23 // pred_fallthru
              _
            // Predicated region
            $region29: #{depthwise_conv2d_pallas.1} parent=23 // pred_check
              _
            $region30: #{depthwise_conv2d_pallas.1} parent=23 // pred_check_branch
              %137 = sbr.rel target = $region32
            $region31: #{depthwise_conv2d_pallas.1} parent=23 // pred_region
              loop: start=0, step=1, limit=1
              $region33: #{depthwise_conv2d_pallas.1} parent=31 // loop_pre_header
                _
              $region34: #{depthwise_conv2d_pallas.1} parent=31 // loop_header
                %s140 = sphi 0, %s144
                %p141 = scmp.ge.s32.totalorder %s140, 1
                %s145 = sphi %s131, %s131
                %s146 = sphi %s127, %s127
              $region35: #{depthwise_conv2d_pallas.1} parent=31 // loop_header_branch
                %143 = sbr.rel (%p141) target = $region39
              $region36: #{depthwise_conv2d_pallas.1} parent=31 // loop_body
                %v147 = vld [vmem:[%s145] sm:$0xff]
                %148 = vst [vmem:[%s146] sm:$0xff] %v147
                %v149 = vld [vmem:[%s145 + $0x18] sm:$0xff]
                %150 = vst [vmem:[%s146 + $0x8] sm:$0xff] %v149
                %v151 = vld [vmem:[%s145 + $0x30] sm:$0xff]
                %152 = vst [vmem:[%s146 + $0x10] sm:$0xff] %v151
                %v153 = vld [vmem:[%s145 + $0x48] sm:$0xff]
                %154 = vst [vmem:[%s146 + $0x18] sm:$0xff] %v153
                %v155 = vld [vmem:[%s145 + $0x60] sm:$0xff]
                %156 = vst [vmem:[%s146 + $0x20] sm:$0xff] %v155
                %v157 = vld [vmem:[%s145 + $0x78] sm:$0xff]
                %158 = vst [vmem:[%s146 + $0x28] sm:$0xff] %v157
                %v159 = vld [vmem:[%s145 + $0x90] sm:$0xff]
                %160 = vst [vmem:[%s146 + $0x30] sm:$0xff] %v159
              $region37: #{depthwise_conv2d_pallas.1} parent=31 // loop_footer
                %s144 = sadd.s32 1, %s140
              $region38: #{depthwise_conv2d_pallas.1} parent=31 // loop_footer_branch
                %139 = sbr.rel target = $region34
              $region39: #{depthwise_conv2d_pallas.1} parent=31 // loop_exit
                _
            $region32: #{depthwise_conv2d_pallas.1} parent=23 // pred_fallthru
              _
          $region24: #{depthwise_conv2d_pallas.1} parent=19 // pred_fallthru
            _
          %187 = vnop
        $region20: #{depthwise_conv2d_pallas.1} parent=15 // pred_fallthru
          _
        // Predicated region
        $region55: #{depthwise_conv2d_pallas.1} parent=15 // pred_check
          %p188 = pneg %p68
        $region56: #{depthwise_conv2d_pallas.1} parent=15 // pred_check_branch
          %190 = sbr.rel (%p188) target = $region58
        $region57: #{depthwise_conv2d_pallas.1} parent=15 // pred_region
          %s191 = sand.u32 %s58, 1
          %s192 = sand.u32 %s58, 1
          %s193 = smul.addr %s192, 40
          %s194 = scalar_lea.vmem [#allocation4], %s193
          %s195 = smul.addr %s16, 8
          %s196 = scalar_lea.vmem %s1, %s195
          // Predicated region
          $region59: #{depthwise_conv2d_pallas.1} parent=57 // pred_check
            _
          $region60: #{depthwise_conv2d_pallas.1} parent=57 // pred_check_branch
            %198 = sbr.rel (0) target = $region62
          $region61: #{depthwise_conv2d_pallas.1} parent=57 // pred_region
            // Predicated region
            $region63: #{depthwise_conv2d_pallas.1} parent=61 // pred_check
              _
            $region64: #{depthwise_conv2d_pallas.1} parent=61 // pred_check_branch
              %200 = sbr.rel (0) target = $region66
            $region65: #{depthwise_conv2d_pallas.1} parent=61 // pred_region
              // Predicated region
              $region78: #{depthwise_conv2d_pallas.1} parent=65 // pred_check
                _
              $region79: #{depthwise_conv2d_pallas.1} parent=65 // pred_check_branch
                %223 = sbr.rel (0) target = $region81
              $region80: #{depthwise_conv2d_pallas.1} parent=65 // pred_region
                loop: start=0, step=1, limit=1
                $region82: #{depthwise_conv2d_pallas.1} parent=80 // loop_pre_header
                  _
                $region83: #{depthwise_conv2d_pallas.1} parent=80 // loop_header
                  %s225 = sphi 0, %s229
                  %p226 = scmp.ge.s32.totalorder %s225, 1
                  %s230 = sphi %s196, %s196
                  %s231 = sphi %s194, %s194
                $region84: #{depthwise_conv2d_pallas.1} parent=80 // loop_header_branch
                  %228 = sbr.rel (%p226) target = $region88
                $region85: #{depthwise_conv2d_pallas.1} parent=80 // loop_body
                  %v232 = vld [vmem:[%s230] sm:$0xff]
                  %233 = vst [vmem:[%s231] sm:$0xff] %v232
                  %v234 = vld [vmem:[%s230 + $0x18] sm:$0xff]
                  %235 = vst [vmem:[%s231 + $0x8] sm:$0xff] %v234
                  %v236 = vld [vmem:[%s230 + $0x30] sm:$0xff]
                  %237 = vst [vmem:[%s231 + $0x10] sm:$0xff] %v236
                  %v238 = vld [vmem:[%s230 + $0x48] sm:$0xff]
                  %239 = vst [vmem:[%s231 + $0x18] sm:$0xff] %v238
                  %v240 = vld [vmem:[%s230 + $0x60] sm:$0xff]
                  %241 = vst [vmem:[%s231 + $0x20] sm:$0xff] %v240
                $region86: #{depthwise_conv2d_pallas.1} parent=80 // loop_footer
                  %s229 = sadd.s32 1, %s225
                $region87: #{depthwise_conv2d_pallas.1} parent=80 // loop_footer_branch
                  %224 = sbr.rel target = $region83
                $region88: #{depthwise_conv2d_pallas.1} parent=80 // loop_exit
                  _
              $region81: #{depthwise_conv2d_pallas.1} parent=65 // pred_fallthru
                _
              // Predicated region
              $region89: #{depthwise_conv2d_pallas.1} parent=65 // pred_check
                _
              $region90: #{depthwise_conv2d_pallas.1} parent=65 // pred_check_branch
                %243 = sbr.rel target = $region92
              $region91: #{depthwise_conv2d_pallas.1} parent=65 // pred_region
                _
              $region92: #{depthwise_conv2d_pallas.1} parent=65 // pred_fallthru
                _
            $region66: #{depthwise_conv2d_pallas.1} parent=61 // pred_fallthru
              _
            // Predicated region
            $region67: #{depthwise_conv2d_pallas.1} parent=61 // pred_check
              _
            $region68: #{depthwise_conv2d_pallas.1} parent=61 // pred_check_branch
              %202 = sbr.rel target = $region70
            $region69: #{depthwise_conv2d_pallas.1} parent=61 // pred_region
              loop: start=0, step=1, limit=1
              $region71: #{depthwise_conv2d_pallas.1} parent=69 // loop_pre_header
                _
              $region72: #{depthwise_conv2d_pallas.1} parent=69 // loop_header
                %s205 = sphi 0, %s209
                %p206 = scmp.ge.s32.totalorder %s205, 1
                %s210 = sphi %s196, %s196
                %s211 = sphi %s194, %s194
              $region73: #{depthwise_conv2d_pallas.1} parent=69 // loop_header_branch
                %208 = sbr.rel (%p206) target = $region77
              $region74: #{depthwise_conv2d_pallas.1} parent=69 // loop_body
                %v212 = vld [vmem:[%s210] sm:$0xff]
                %213 = vst [vmem:[%s211] sm:$0xff] %v212
                %v214 = vld [vmem:[%s210 + $0x18] sm:$0xff]
                %215 = vst [vmem:[%s211 + $0x8] sm:$0xff] %v214
                %v216 = vld [vmem:[%s210 + $0x30] sm:$0xff]
                %217 = vst [vmem:[%s211 + $0x10] sm:$0xff] %v216
                %v218 = vld [vmem:[%s210 + $0x48] sm:$0xff]
                %219 = vst [vmem:[%s211 + $0x18] sm:$0xff] %v218
                %v220 = vld [vmem:[%s210 + $0x60] sm:$0xff]
                %221 = vst [vmem:[%s211 + $0x20] sm:$0xff] %v220
              $region75: #{depthwise_conv2d_pallas.1} parent=69 // loop_footer
                %s209 = sadd.s32 1, %s205
              $region76: #{depthwise_conv2d_pallas.1} parent=69 // loop_footer_branch
                %204 = sbr.rel target = $region72
              $region77: #{depthwise_conv2d_pallas.1} parent=69 // loop_exit
                _
            $region70: #{depthwise_conv2d_pallas.1} parent=61 // pred_fallthru
              _
          $region62: #{depthwise_conv2d_pallas.1} parent=57 // pred_fallthru
            _
          %244 = vnop
        $region58: #{depthwise_conv2d_pallas.1} parent=15 // pred_fallthru
          _
      $region16: #{depthwise_conv2d_pallas.1} parent=5 // pred_fallthru
        _
      %p245 = scmp.le.s32.totalorder 1, %s8
      %p246 = scmp.lt.s32.totalorder %s8, 7
      %p247 = pnand %p245, %p246
      %p248 = pneg %p247
      // Predicated region
      $region93: #{depthwise_conv2d_pallas.1} parent=5 // pred_check
        _
      $region94: #{depthwise_conv2d_pallas.1} parent=5 // pred_check_branch
        %250 = sbr.rel (%p247) target = $region96
      $region95: #{depthwise_conv2d_pallas.1} parent=5 // pred_region
        %s251 = ssub.s32 %s8, 1
        %s252 = sand.u32 %s35, 1
        %s253 = sand.u32 %s35, 1
        %s254 = smul.addr %s253, 56
        %s255 = scalar_lea.vmem [#allocation3], %s254
        // Predicated region
        $region97: #{depthwise_conv2d_pallas.1} parent=95 // pred_check
          %p256 = pneg %p48
        $region98: #{depthwise_conv2d_pallas.1} parent=95 // pred_check_branch
          %258 = sbr.rel (%p256) target = $region100
        $region99: #{depthwise_conv2d_pallas.1} parent=95 // pred_region
          _
        $region100: #{depthwise_conv2d_pallas.1} parent=95 // pred_fallthru
          _
        %s259 = sand.u32 %s61, 1
        %s260 = sand.u32 %s61, 1
        %s261 = smul.addr %s260, 40
        %s262 = scalar_lea.vmem [#allocation4], %s261
        // Predicated region
        $region101: #{depthwise_conv2d_pallas.1} parent=95 // pred_check
          %p263 = pneg %p74
        $region102: #{depthwise_conv2d_pallas.1} parent=95 // pred_check_branch
          %265 = sbr.rel (%p263) target = $region104
        $region103: #{depthwise_conv2d_pallas.1} parent=95 // pred_region
          _
        $region104: #{depthwise_conv2d_pallas.1} parent=95 // pred_fallthru
          _
        %s266 = sand.u32 %s35, 1
        %s267 = sand.u32 %s35, 1
        %s268 = smul.addr %s267, 56
        %s269 = scalar_lea.vmem [#allocation3], %s268
        %p270 = pneg %p48
        %p271 = pneg %p45
        %s272 = sand.u32 %s61, 1
        %s273 = sand.u32 %s61, 1
        %s274 = smul.addr %s273, 40
        %s275 = scalar_lea.vmem [#allocation4], %s274
        %p276 = pneg %p74
        %p277 = pneg %p71
        %p278 = pneg %p102
        %p279 = pneg %p99
        %s280 = sand.u32 %s89, 1
        %s281 = sand.u32 %s89, 1
        %s282 = smul.addr %s281, 56
        %s283 = scalar_lea.vmem [#allocation5], %s282
        %284 = vst [vmem:[#allocation2] sm:$0xff] 0.0
        %285 = vst [vmem:[#allocation2 + $0x8] sm:$0xff] 0.0
        %286 = vst [vmem:[#allocation2 + $0x10] sm:$0xff] 0.0
        %287 = vst [vmem:[#allocation2 + $0x18] sm:$0xff] 0.0
        %288 = vst [vmem:[#allocation2 + $0x20] sm:$0xff] 0.0
        %289 = vst [vmem:[#allocation2 + $0x28] sm:$0xff] 0.0
        %290 = vst [vmem:[#allocation2 + $0x30] sm:$0xff] 0.0
        %291 = vst [vmem:[#allocation2 + $0x38] sm:$0xff] 0.0
        %292 = vst [vmem:[#allocation2 + $0x40] sm:$0xff] 0.0
        %293 = vst [vmem:[#allocation2 + $0x48] sm:$0xff] 0.0
        %294 = vst [vmem:[#allocation2 + $0x50] sm:$0xff] 0.0
        %295 = vst [vmem:[#allocation2 + $0x58] sm:$0xff] 0.0
        %296 = vst [vmem:[#allocation2 + $0x60] sm:$0xff] 0.0
        %297 = vst [vmem:[#allocation2 + $0x68] sm:$0xff] 0.0
        %298 = vst [vmem:[#allocation2 + $0x70] sm:$0xff] 0.0
        %299 = vst [vmem:[#allocation2 + $0x78] sm:$0xff] 0.0
        %300 = vst [vmem:[#allocation2 + $0x80] sm:$0xff] 0.0
        %301 = vst [vmem:[#allocation2 + $0x88] sm:$0xff] 0.0
        %302 = vst [vmem:[#allocation2 + $0x90] sm:$0xff] 0.0
        %303 = vst [vmem:[#allocation2 + $0x98] sm:$0xff] 0.0
        %304 = vst [vmem:[#allocation2 + $0xa0] sm:$0xff] 0.0
        %305 = vst [vmem:[#allocation2 + $0xa8] sm:$0xff] 0.0
        %v306 = vld [vmem:[%s255] sm:$0x7f]
        %v307 = vld [vmem:[%s255 + $0x8] sm:$0x7f]
        %v308 = vld [vmem:[%s255 + $0x10] sm:$0x7f]
        %v309 = vld [vmem:[%s255 + $0x18] sm:$0x7f]
        %v310 = vld [vmem:[%s255 + $0x20] sm:$0x7f]
        %v311 = vld [vmem:[%s255 + $0x28] sm:$0x7f]
        %v312 = vld [vmem:[%s255 + $0x30] sm:$0x7f]
        %s313 = scalar_lea.vmem [#allocation2], 32
        %314 = vst [vmem:[%s313 + $0x2] sm:$0x7f] %v306
        %315 = vst [vmem:[%s313 + $0x12] sm:$0x7f] %v307
        %316 = vst [vmem:[%s313 + $0x22] sm:$0x7f] %v308
        %317 = vst [vmem:[%s313 + $0x32] sm:$0x7f] %v309
        %318 = vst [vmem:[%s313 + $0x42] sm:$0x7f] %v310
        %319 = vst [vmem:[%s313 + $0x52] sm:$0x7f] %v311
        %320 = vst [vmem:[%s313 + $0x62] sm:$0x7f] %v312
        %v321 = vld [vmem:[%s262] sm:$0x1f]
        %v322 = vld [vmem:[%s262 + $0x8] sm:$0x1f]
        %v323 = vld [vmem:[%s262 + $0x10] sm:$0x1f]
        %v324 = vld [vmem:[%s262 + $0x18] sm:$0x1f]
        %v325 = vld [vmem:[%s262 + $0x20] sm:$0x1f]
        %v326 = vld [vmem:[#allocation2] sm:$0xff]
        %v327 = vld [vmem:[#allocation2 + $0x8] sm:$0xff]
        %v328 = vld [vmem:[#allocation2 + $0x10] sm:$0xff]
        %v329 = vld [vmem:[#allocation2 + $0x18] sm:$0xff]
        %v330 = vld [vmem:[#allocation2 + $0x20] sm:$0xff]
        %v331 = vld [vmem:[#allocation2 + $0x28] sm:$0xff]
        %v332 = vld [vmem:[#allocation2 + $0x30] sm:$0xff]
        %v333 = vld [vmem:[#allocation2 + $0x38] sm:$0xff]
        %v334 = vld [vmem:[#allocation2 + $0x40] sm:$0xff]
        %v335 = vld [vmem:[#allocation2 + $0x48] sm:$0xff]
        %v336 = vld [vmem:[#allocation2 + $0x50] sm:$0xff]
        %v337 = vld [vmem:[#allocation2 + $0x58] sm:$0xff]
        %v338 = vld [vmem:[#allocation2 + $0x60] sm:$0xff]
        %v339 = vld [vmem:[#allocation2 + $0x68] sm:$0xff]
        %v340 = vlaneseq
        %v341 = vshrl.u32 %v340, 7
        %v342 = vsub.s32 0, %v341
        %v343 = vrot.slane %v321, %v342
        %v344 = vmul.f32 %v326, %v343
        %v345 = vmul.f32 %v328, %v343
        %v346 = vmul.f32 %v330, %v343
        %v347 = vmul.f32 %v332, %v343
        %v348 = vmul.f32 %v334, %v343
        %v349 = vmul.f32 %v336, %v343
        %v350 = vmul.f32 %v338, %v343
        %v351 = vadd.f32 %v344, 0.0
        %v352 = vadd.f32 %v345, 0.0
        %v353 = vadd.f32 %v346, 0.0
        %v354 = vadd.f32 %v347, 0.0
        %v355 = vadd.f32 %v348, 0.0
        %v356 = vadd.f32 %v349, 0.0
        %v357 = vadd.f32 %v350, 0.0
        %v358 = vlaneseq
        %v359 = vshrl.u32 %v358, 7
        %v360 = vsub.s32 1, %v359
        %v361 = vrot.slane %v321, %v360
        %v362 = vmul.f32 %v326, %v361
        %v363 = vmul.f32 %v328, %v361
        %v364 = vmul.f32 %v330, %v361
        %v365 = vmul.f32 %v332, %v361
        %v366 = vmul.f32 %v334, %v361
        %v367 = vmul.f32 %v336, %v361
        %v368 = vmul.f32 %v338, %v361
        %v376 = vrot.slane %v362, 1
        %v377 = vrot.slane %v363, 1
        %v378 = vrot.slane %v364, 1
        %v379 = vrot.slane %v365, 1
        %v380 = vrot.slane %v366, 1
        %v381 = vrot.slane %v367, 1
        %v382 = vrot.slane %v368, 1
        %v390 = vadd.f32 %v351, %v376
        %v391 = vadd.f32 %v352, %v377
        %v392 = vadd.f32 %v353, %v378
        %v393 = vadd.f32 %v354, %v379
        %v394 = vadd.f32 %v355, %v380
        %v395 = vadd.f32 %v356, %v381
        %v396 = vadd.f32 %v357, %v382
        %v397 = vlaneseq
        %v398 = vshrl.u32 %v397, 7
        %v399 = vsub.s32 2, %v398
        %v400 = vrot.slane %v321, %v399
        %v401 = vmul.f32 %v326, %v400
        %v402 = vmul.f32 %v327, %v400
        %v403 = vmul.f32 %v328, %v400
        %v404 = vmul.f32 %v329, %v400
        %v405 = vmul.f32 %v330, %v400
        %v406 = vmul.f32 %v331, %v400
        %v407 = vmul.f32 %v332, %v400
        %v408 = vmul.f32 %v333, %v400
        %v409 = vmul.f32 %v334, %v400
        %v410 = vmul.f32 %v335, %v400
        %v411 = vmul.f32 %v336, %v400
        %v412 = vmul.f32 %v337, %v400
        %v413 = vmul.f32 %v338, %v400
        %v414 = vmul.f32 %v339, %v400
        %vm429 = vcmask 1045504
        %v430 = vrot.slane %v401, 2
        %v431 = vrot.slane %v402, 2
        %v432 = vsel %vm429, %v430, %v431
        %v433 = vrot.slane %v403, 2
        %v434 = vrot.slane %v404, 2
        %v435 = vsel %vm429, %v433, %v434
        %v436 = vrot.slane %v405, 2
        %v437 = vrot.slane %v406, 2
        %v438 = vsel %vm429, %v436, %v437
        %v439 = vrot.slane %v407, 2
        %v440 = vrot.slane %v408, 2
        %v441 = vsel %vm429, %v439, %v440
        %v442 = vrot.slane %v409, 2
        %v443 = vrot.slane %v410, 2
        %v444 = vsel %vm429, %v442, %v443
        %v445 = vrot.slane %v411, 2
        %v446 = vrot.slane %v412, 2
        %v447 = vsel %vm429, %v445, %v446
        %v448 = vrot.slane %v413, 2
        %v449 = vrot.slane %v414, 2
        %v450 = vsel %vm429, %v448, %v449
        %v458 = vadd.f32 %v390, %v432
        %v459 = vadd.f32 %v391, %v435
        %v460 = vadd.f32 %v392, %v438
        %v461 = vadd.f32 %v393, %v441
        %v462 = vadd.f32 %v394, %v444
        %v463 = vadd.f32 %v395, %v447
        %v464 = vadd.f32 %v396, %v450
        %v465 = vlaneseq
        %v466 = vshrl.u32 %v465, 7
        %v467 = vsub.s32 3, %v466
        %v468 = vrot.slane %v321, %v467
        %v469 = vmul.f32 %v326, %v468
        %v470 = vmul.f32 %v327, %v468
        %v471 = vmul.f32 %v328, %v468
        %v472 = vmul.f32 %v329, %v468
        %v473 = vmul.f32 %v330, %v468
        %v474 = vmul.f32 %v331, %v468
        %v475 = vmul.f32 %v332, %v468
        %v476 = vmul.f32 %v333, %v468
        %v477 = vmul.f32 %v334, %v468
        %v478 = vmul.f32 %v335, %v468
        %v479 = vmul.f32 %v336, %v468
        %v480 = vmul.f32 %v337, %v468
        %v481 = vmul.f32 %v338, %v468
        %v482 = vmul.f32 %v339, %v468
        %vm497 = vcmask 1044480
        %v498 = vrot.slane %v469, 3
        %v499 = vrot.slane %v470, 3
        %v500 = vsel %vm497, %v498, %v499
        %v501 = vrot.slane %v471, 3
        %v502 = vrot.slane %v472, 3
        %v503 = vsel %vm497, %v501, %v502
        %v504 = vrot.slane %v473, 3
        %v505 = vrot.slane %v474, 3
        %v506 = vsel %vm497, %v504, %v505
        %v507 = vrot.slane %v475, 3
        %v508 = vrot.slane %v476, 3
        %v509 = vsel %vm497, %v507, %v508
        %v510 = vrot.slane %v477, 3
        %v511 = vrot.slane %v478, 3
        %v512 = vsel %vm497, %v510, %v511
        %v513 = vrot.slane %v479, 3
        %v514 = vrot.slane %v480, 3
        %v515 = vsel %vm497, %v513, %v514
        %v516 = vrot.slane %v481, 3
        %v517 = vrot.slane %v482, 3
        %v518 = vsel %vm497, %v516, %v517
        %v526 = vadd.f32 %v458, %v500
        %v527 = vadd.f32 %v459, %v503
        %v528 = vadd.f32 %v460, %v506
        %v529 = vadd.f32 %v461, %v509
        %v530 = vadd.f32 %v462, %v512
        %v531 = vadd.f32 %v463, %v515
        %v532 = vadd.f32 %v464, %v518
        %v533 = vlaneseq
        %v534 = vshrl.u32 %v533, 7
        %v535 = vsub.s32 4, %v534
        %v536 = vrot.slane %v321, %v535
        %v537 = vmul.f32 %v326, %v536
        %v538 = vmul.f32 %v327, %v536
        %v539 = vmul.f32 %v328, %v536
        %v540 = vmul.f32 %v329, %v536
        %v541 = vmul.f32 %v330, %v536
        %v542 = vmul.f32 %v331, %v536
        %v543 = vmul.f32 %v332, %v536
        %v544 = vmul.f32 %v333, %v536
        %v545 = vmul.f32 %v334, %v536
        %v546 = vmul.f32 %v335, %v536
        %v547 = vmul.f32 %v336, %v536
        %v548 = vmul.f32 %v337, %v536
        %v549 = vmul.f32 %v338, %v536
        %v550 = vmul.f32 %v339, %v536
        %vm565 = vcmask 1043456
        %v566 = vrot.slane %v537, 4
        %v567 = vrot.slane %v538, 4
        %v568 = vsel %vm565, %v566, %v567
        %v569 = vrot.slane %v539, 4
        %v570 = vrot.slane %v540, 4
        %v571 = vsel %vm565, %v569, %v570
        %v572 = vrot.slane %v541, 4
        %v573 = vrot.slane %v542, 4
        %v574 = vsel %vm565, %v572, %v573
        %v575 = vrot.slane %v543, 4
        %v576 = vrot.slane %v544, 4
        %v577 = vsel %vm565, %v575, %v576
        %v578 = vrot.slane %v545, 4
        %v579 = vrot.slane %v546, 4
        %v580 = vsel %vm565, %v578, %v579
        %v581 = vrot.slane %v547, 4
        %v582 = vrot.slane %v548, 4
        %v583 = vsel %vm565, %v581, %v582
        %v584 = vrot.slane %v549, 4
        %v585 = vrot.slane %v550, 4
        %v586 = vsel %vm565, %v584, %v585
        %v594 = vadd.f32 %v526, %v568
        %v595 = vadd.f32 %v527, %v571
        %v596 = vadd.f32 %v528, %v574
        %v597 = vadd.f32 %v529, %v577
        %v598 = vadd.f32 %v530, %v580
        %v599 = vadd.f32 %v531, %v583
        %v600 = vadd.f32 %v532, %v586
        %s601 = scalar_lea.vmem [#allocation2], 16
        %v602 = vld [vmem:[%s601] sm:$0xff]
        %v603 = vld [vmem:[%s601 + $0x8] sm:$0xff]
        %v604 = vld [vmem:[%s601 + $0x10] sm:$0xff]
        %v605 = vld [vmem:[%s601 + $0x18] sm:$0xff]
        %v606 = vld [vmem:[%s601 + $0x20] sm:$0xff]
        %v607 = vld [vmem:[%s601 + $0x28] sm:$0xff]
        %v608 = vld [vmem:[%s601 + $0x30] sm:$0xff]
        %v609 = vld [vmem:[%s601 + $0x38] sm:$0xff]
        %v610 = vld [vmem:[%s601 + $0x40] sm:$0xff]
        %v611 = vld [vmem:[%s601 + $0x48] sm:$0xff]
        %v612 = vld [vmem:[%s601 + $0x50] sm:$0xff]
        %v613 = vld [vmem:[%s601 + $0x58] sm:$0xff]
        %v614 = vld [vmem:[%s601 + $0x60] sm:$0xff]
        %v615 = vld [vmem:[%s601 + $0x68] sm:$0xff]
        %v616 = vlaneseq
        %v617 = vshrl.u32 %v616, 7
        %v618 = vsub.s32 0, %v617
        %v619 = vrot.slane %v322, %v618
        %v620 = vmul.f32 %v602, %v619
        %v621 = vmul.f32 %v604, %v619
        %v622 = vmul.f32 %v606, %v619
        %v623 = vmul.f32 %v608, %v619
        %v624 = vmul.f32 %v610, %v619
        %v625 = vmul.f32 %v612, %v619
        %v626 = vmul.f32 %v614, %v619
        %v627 = vadd.f32 %v594, %v620
        %v628 = vadd.f32 %v595, %v621
        %v629 = vadd.f32 %v596, %v622
        %v630 = vadd.f32 %v597, %v623
        %v631 = vadd.f32 %v598, %v624
        %v632 = vadd.f32 %v599, %v625
        %v633 = vadd.f32 %v600, %v626
        %v634 = vlaneseq
        %v635 = vshrl.u32 %v634, 7
        %v636 = vsub.s32 1, %v635
        %v637 = vrot.slane %v322, %v636
        %v638 = vmul.f32 %v602, %v637
        %v639 = vmul.f32 %v604, %v637
        %v640 = vmul.f32 %v606, %v637
        %v641 = vmul.f32 %v608, %v637
        %v642 = vmul.f32 %v610, %v637
        %v643 = vmul.f32 %v612, %v637
        %v644 = vmul.f32 %v614, %v637
        %v652 = vrot.slane %v638, 1
        %v653 = vrot.slane %v639, 1
        %v654 = vrot.slane %v640, 1
        %v655 = vrot.slane %v641, 1
        %v656 = vrot.slane %v642, 1
        %v657 = vrot.slane %v643, 1
        %v658 = vrot.slane %v644, 1
        %v666 = vadd.f32 %v627, %v652
        %v667 = vadd.f32 %v628, %v653
        %v668 = vadd.f32 %v629, %v654
        %v669 = vadd.f32 %v630, %v655
        %v670 = vadd.f32 %v631, %v656
        %v671 = vadd.f32 %v632, %v657
        %v672 = vadd.f32 %v633, %v658
        %v673 = vlaneseq
        %v674 = vshrl.u32 %v673, 7
        %v675 = vsub.s32 2, %v674
        %v676 = vrot.slane %v322, %v675
        %v677 = vmul.f32 %v602, %v676
        %v678 = vmul.f32 %v603, %v676
        %v679 = vmul.f32 %v604, %v676
        %v680 = vmul.f32 %v605, %v676
        %v681 = vmul.f32 %v606, %v676
        %v682 = vmul.f32 %v607, %v676
        %v683 = vmul.f32 %v608, %v676
        %v684 = vmul.f32 %v609, %v676
        %v685 = vmul.f32 %v610, %v676
        %v686 = vmul.f32 %v611, %v676
        %v687 = vmul.f32 %v612, %v676
        %v688 = vmul.f32 %v613, %v676
        %v689 = vmul.f32 %v614, %v676
        %v690 = vmul.f32 %v615, %v676
        %v705 = vrot.slane %v677, 2
        %v706 = vrot.slane %v678, 2
        %v707 = vsel %vm429, %v705, %v706
        %v708 = vrot.slane %v679, 2
        %v709 = vrot.slane %v680, 2
        %v710 = vsel %vm429, %v708, %v709
        %v711 = vrot.slane %v681, 2
        %v712 = vrot.slane %v682, 2
        %v713 = vsel %vm429, %v711, %v712
        %v714 = vrot.slane %v683, 2
        %v715 = vrot.slane %v684, 2
        %v716 = vsel %vm429, %v714, %v715
        %v717 = vrot.slane %v685, 2
        %v718 = vrot.slane %v686, 2
        %v719 = vsel %vm429, %v717, %v718
        %v720 = vrot.slane %v687, 2
        %v721 = vrot.slane %v688, 2
        %v722 = vsel %vm429, %v720, %v721
        %v723 = vrot.slane %v689, 2
        %v724 = vrot.slane %v690, 2
        %v725 = vsel %vm429, %v723, %v724
        %v733 = vadd.f32 %v666, %v707
        %v734 = vadd.f32 %v667, %v710
        %v735 = vadd.f32 %v668, %v713
        %v736 = vadd.f32 %v669, %v716
        %v737 = vadd.f32 %v670, %v719
        %v738 = vadd.f32 %v671, %v722
        %v739 = vadd.f32 %v672, %v725
        %v740 = vlaneseq
        %v741 = vshrl.u32 %v740, 7
        %v742 = vsub.s32 3, %v741
        %v743 = vrot.slane %v322, %v742
        %v744 = vmul.f32 %v602, %v743
        %v745 = vmul.f32 %v603, %v743
        %v746 = vmul.f32 %v604, %v743
        %v747 = vmul.f32 %v605, %v743
        %v748 = vmul.f32 %v606, %v743
        %v749 = vmul.f32 %v607, %v743
        %v750 = vmul.f32 %v608, %v743
        %v751 = vmul.f32 %v609, %v743
        %v752 = vmul.f32 %v610, %v743
        %v753 = vmul.f32 %v611, %v743
        %v754 = vmul.f32 %v612, %v743
        %v755 = vmul.f32 %v613, %v743
        %v756 = vmul.f32 %v614, %v743
        %v757 = vmul.f32 %v615, %v743
        %v772 = vrot.slane %v744, 3
        %v773 = vrot.slane %v745, 3
        %v774 = vsel %vm497, %v772, %v773
        %v775 = vrot.slane %v746, 3
        %v776 = vrot.slane %v747, 3
        %v777 = vsel %vm497, %v775, %v776
        %v778 = vrot.slane %v748, 3
        %v779 = vrot.slane %v749, 3
        %v780 = vsel %vm497, %v778, %v779
        %v781 = vrot.slane %v750, 3
        %v782 = vrot.slane %v751, 3
        %v783 = vsel %vm497, %v781, %v782
        %v784 = vrot.slane %v752, 3
        %v785 = vrot.slane %v753, 3
        %v786 = vsel %vm497, %v784, %v785
        %v787 = vrot.slane %v754, 3
        %v788 = vrot.slane %v755, 3
        %v789 = vsel %vm497, %v787, %v788
        %v790 = vrot.slane %v756, 3
        %v791 = vrot.slane %v757, 3
        %v792 = vsel %vm497, %v790, %v791
        %v800 = vadd.f32 %v733, %v774
        %v801 = vadd.f32 %v734, %v777
        %v802 = vadd.f32 %v735, %v780
        %v803 = vadd.f32 %v736, %v783
        %v804 = vadd.f32 %v737, %v786
        %v805 = vadd.f32 %v738, %v789
        %v806 = vadd.f32 %v739, %v792
        %v807 = vlaneseq
        %v808 = vshrl.u32 %v807, 7
        %v809 = vsub.s32 4, %v808
        %v810 = vrot.slane %v322, %v809
        %v811 = vmul.f32 %v602, %v810
        %v812 = vmul.f32 %v603, %v810
        %v813 = vmul.f32 %v604, %v810
        %v814 = vmul.f32 %v605, %v810
        %v815 = vmul.f32 %v606, %v810
        %v816 = vmul.f32 %v607, %v810
        %v817 = vmul.f32 %v608, %v810
        %v818 = vmul.f32 %v609, %v810
        %v819 = vmul.f32 %v610, %v810
        %v820 = vmul.f32 %v611, %v810
        %v821 = vmul.f32 %v612, %v810
        %v822 = vmul.f32 %v613, %v810
        %v823 = vmul.f32 %v614, %v810
        %v824 = vmul.f32 %v615, %v810
        %v839 = vrot.slane %v811, 4
        %v840 = vrot.slane %v812, 4
        %v841 = vsel %vm565, %v839, %v840
        %v842 = vrot.slane %v813, 4
        %v843 = vrot.slane %v814, 4
        %v844 = vsel %vm565, %v842, %v843
        %v845 = vrot.slane %v815, 4
        %v846 = vrot.slane %v816, 4
        %v847 = vsel %vm565, %v845, %v846
        %v848 = vrot.slane %v817, 4
        %v849 = vrot.slane %v818, 4
        %v850 = vsel %vm565, %v848, %v849
        %v851 = vrot.slane %v819, 4
        %v852 = vrot.slane %v820, 4
        %v853 = vsel %vm565, %v851, %v852
        %v854 = vrot.slane %v821, 4
        %v855 = vrot.slane %v822, 4
        %v856 = vsel %vm565, %v854, %v855
        %v857 = vrot.slane %v823, 4
        %v858 = vrot.slane %v824, 4
        %v859 = vsel %vm565, %v857, %v858
        %v867 = vadd.f32 %v800, %v841
        %v868 = vadd.f32 %v801, %v844
        %v869 = vadd.f32 %v802, %v847
        %v870 = vadd.f32 %v803, %v850
        %v871 = vadd.f32 %v804, %v853
        %v872 = vadd.f32 %v805, %v856
        %v873 = vadd.f32 %v806, %v859
        %v874 = vld [vmem:[%s313] sm:$0xff]
        %v875 = vld [vmem:[%s313 + $0x8] sm:$0xff]
        %v876 = vld [vmem:[%s313 + $0x10] sm:$0xff]
        %v877 = vld [vmem:[%s313 + $0x18] sm:$0xff]
        %v878 = vld [vmem:[%s313 + $0x20] sm:$0xff]
        %v879 = vld [vmem:[%s313 + $0x28] sm:$0xff]
        %v880 = vld [vmem:[%s313 + $0x30] sm:$0xff]
        %v881 = vld [vmem:[%s313 + $0x38] sm:$0xff]
        %v882 = vld [vmem:[%s313 + $0x40] sm:$0xff]
        %v883 = vld [vmem:[%s313 + $0x48] sm:$0xff]
        %v884 = vld [vmem:[%s313 + $0x50] sm:$0xff]
        %v885 = vld [vmem:[%s313 + $0x58] sm:$0xff]
        %v886 = vld [vmem:[%s313 + $0x60] sm:$0xff]
        %v887 = vld [vmem:[%s313 + $0x68] sm:$0xff]
        %v888 = vlaneseq
        %v889 = vshrl.u32 %v888, 7
        %v890 = vsub.s32 0, %v889
        %v891 = vrot.slane %v323, %v890
        %v892 = vmul.f32 %v874, %v891
        %v893 = vmul.f32 %v876, %v891
        %v894 = vmul.f32 %v878, %v891
        %v895 = vmul.f32 %v880, %v891
        %v896 = vmul.f32 %v882, %v891
        %v897 = vmul.f32 %v884, %v891
        %v898 = vmul.f32 %v886, %v891
        %v899 = vadd.f32 %v867, %v892
        %v900 = vadd.f32 %v868, %v893
        %v901 = vadd.f32 %v869, %v894
        %v902 = vadd.f32 %v870, %v895
        %v903 = vadd.f32 %v871, %v896
        %v904 = vadd.f32 %v872, %v897
        %v905 = vadd.f32 %v873, %v898
        %v906 = vlaneseq
        %v907 = vshrl.u32 %v906, 7
        %v908 = vsub.s32 1, %v907
        %v909 = vrot.slane %v323, %v908
        %v910 = vmul.f32 %v874, %v909
        %v911 = vmul.f32 %v876, %v909
        %v912 = vmul.f32 %v878, %v909
        %v913 = vmul.f32 %v880, %v909
        %v914 = vmul.f32 %v882, %v909
        %v915 = vmul.f32 %v884, %v909
        %v916 = vmul.f32 %v886, %v909
        %v924 = vrot.slane %v910, 1
        %v925 = vrot.slane %v911, 1
        %v926 = vrot.slane %v912, 1
        %v927 = vrot.slane %v913, 1
        %v928 = vrot.slane %v914, 1
        %v929 = vrot.slane %v915, 1
        %v930 = vrot.slane %v916, 1
        %v938 = vadd.f32 %v899, %v924
        %v939 = vadd.f32 %v900, %v925
        %v940 = vadd.f32 %v901, %v926
        %v941 = vadd.f32 %v902, %v927
        %v942 = vadd.f32 %v903, %v928
        %v943 = vadd.f32 %v904, %v929
        %v944 = vadd.f32 %v905, %v930
        %v945 = vlaneseq
        %v946 = vshrl.u32 %v945, 7
        %v947 = vsub.s32 2, %v946
        %v948 = vrot.slane %v323, %v947
        %v949 = vmul.f32 %v874, %v948
        %v950 = vmul.f32 %v875, %v948
        %v951 = vmul.f32 %v876, %v948
        %v952 = vmul.f32 %v877, %v948
        %v953 = vmul.f32 %v878, %v948
        %v954 = vmul.f32 %v879, %v948
        %v955 = vmul.f32 %v880, %v948
        %v956 = vmul.f32 %v881, %v948
        %v957 = vmul.f32 %v882, %v948
        %v958 = vmul.f32 %v883, %v948
        %v959 = vmul.f32 %v884, %v948
        %v960 = vmul.f32 %v885, %v948
        %v961 = vmul.f32 %v886, %v948
        %v962 = vmul.f32 %v887, %v948
        %v977 = vrot.slane %v949, 2
        %v978 = vrot.slane %v950, 2
        %v979 = vsel %vm429, %v977, %v978
        %v980 = vrot.slane %v951, 2
        %v981 = vrot.slane %v952, 2
        %v982 = vsel %vm429, %v980, %v981
        %v983 = vrot.slane %v953, 2
        %v984 = vrot.slane %v954, 2
        %v985 = vsel %vm429, %v983, %v984
        %v986 = vrot.slane %v955, 2
        %v987 = vrot.slane %v956, 2
        %v988 = vsel %vm429, %v986, %v987
        %v989 = vrot.slane %v957, 2
        %v990 = vrot.slane %v958, 2
        %v991 = vsel %vm429, %v989, %v990
        %v992 = vrot.slane %v959, 2
        %v993 = vrot.slane %v960, 2
        %v994 = vsel %vm429, %v992, %v993
        %v995 = vrot.slane %v961, 2
        %v996 = vrot.slane %v962, 2
        %v997 = vsel %vm429, %v995, %v996
        %v1005 = vadd.f32 %v938, %v979
        %v1006 = vadd.f32 %v939, %v982
        %v1007 = vadd.f32 %v940, %v985
        %v1008 = vadd.f32 %v941, %v988
        %v1009 = vadd.f32 %v942, %v991
        %v1010 = vadd.f32 %v943, %v994
        %v1011 = vadd.f32 %v944, %v997
        %v1012 = vlaneseq
        %v1013 = vshrl.u32 %v1012, 7
        %v1014 = vsub.s32 3, %v1013
        %v1015 = vrot.slane %v323, %v1014
        %v1016 = vmul.f32 %v874, %v1015
        %v1017 = vmul.f32 %v875, %v1015
        %v1018 = vmul.f32 %v876, %v1015
        %v1019 = vmul.f32 %v877, %v1015
        %v1020 = vmul.f32 %v878, %v1015
        %v1021 = vmul.f32 %v879, %v1015
        %v1022 = vmul.f32 %v880, %v1015
        %v1023 = vmul.f32 %v881, %v1015
        %v1024 = vmul.f32 %v882, %v1015
        %v1025 = vmul.f32 %v883, %v1015
        %v1026 = vmul.f32 %v884, %v1015
        %v1027 = vmul.f32 %v885, %v1015
        %v1028 = vmul.f32 %v886, %v1015
        %v1029 = vmul.f32 %v887, %v1015
        %v1044 = vrot.slane %v1016, 3
        %v1045 = vrot.slane %v1017, 3
        %v1046 = vsel %vm497, %v1044, %v1045
        %v1047 = vrot.slane %v1018, 3
        %v1048 = vrot.slane %v1019, 3
        %v1049 = vsel %vm497, %v1047, %v1048
        %v1050 = vrot.slane %v1020, 3
        %v1051 = vrot.slane %v1021, 3
        %v1052 = vsel %vm497, %v1050, %v1051
        %v1053 = vrot.slane %v1022, 3
        %v1054 = vrot.slane %v1023, 3
        %v1055 = vsel %vm497, %v1053, %v1054
        %v1056 = vrot.slane %v1024, 3
        %v1057 = vrot.slane %v1025, 3
        %v1058 = vsel %vm497, %v1056, %v1057
        %v1059 = vrot.slane %v1026, 3
        %v1060 = vrot.slane %v1027, 3
        %v1061 = vsel %vm497, %v1059, %v1060
        %v1062 = vrot.slane %v1028, 3
        %v1063 = vrot.slane %v1029, 3
        %v1064 = vsel %vm497, %v1062, %v1063
        %v1072 = vadd.f32 %v1005, %v1046
        %v1073 = vadd.f32 %v1006, %v1049
        %v1074 = vadd.f32 %v1007, %v1052
        %v1075 = vadd.f32 %v1008, %v1055
        %v1076 = vadd.f32 %v1009, %v1058
        %v1077 = vadd.f32 %v1010, %v1061
        %v1078 = vadd.f32 %v1011, %v1064
        %v1079 = vlaneseq
        %v1080 = vshrl.u32 %v1079, 7
        %v1081 = vsub.s32 4, %v1080
        %v1082 = vrot.slane %v323, %v1081
        %v1083 = vmul.f32 %v874, %v1082
        %v1084 = vmul.f32 %v875, %v1082
        %v1085 = vmul.f32 %v876, %v1082
        %v1086 = vmul.f32 %v877, %v1082
        %v1087 = vmul.f32 %v878, %v1082
        %v1088 = vmul.f32 %v879, %v1082
        %v1089 = vmul.f32 %v880, %v1082
        %v1090 = vmul.f32 %v881, %v1082
        %v1091 = vmul.f32 %v882, %v1082
        %v1092 = vmul.f32 %v883, %v1082
        %v1093 = vmul.f32 %v884, %v1082
        %v1094 = vmul.f32 %v885, %v1082
        %v1095 = vmul.f32 %v886, %v1082
        %v1096 = vmul.f32 %v887, %v1082
        %v1111 = vrot.slane %v1083, 4
        %v1112 = vrot.slane %v1084, 4
        %v1113 = vsel %vm565, %v1111, %v1112
        %v1114 = vrot.slane %v1085, 4
        %v1115 = vrot.slane %v1086, 4
        %v1116 = vsel %vm565, %v1114, %v1115
        %v1117 = vrot.slane %v1087, 4
        %v1118 = vrot.slane %v1088, 4
        %v1119 = vsel %vm565, %v1117, %v1118
        %v1120 = vrot.slane %v1089, 4
        %v1121 = vrot.slane %v1090, 4
        %v1122 = vsel %vm565, %v1120, %v1121
        %v1123 = vrot.slane %v1091, 4
        %v1124 = vrot.slane %v1092, 4
        %v1125 = vsel %vm565, %v1123, %v1124
        %v1126 = vrot.slane %v1093, 4
        %v1127 = vrot.slane %v1094, 4
        %v1128 = vsel %vm565, %v1126, %v1127
        %v1129 = vrot.slane %v1095, 4
        %v1130 = vrot.slane %v1096, 4
        %v1131 = vsel %vm565, %v1129, %v1130
        %v1139 = vadd.f32 %v1072, %v1113
        %v1140 = vadd.f32 %v1073, %v1116
        %v1141 = vadd.f32 %v1074, %v1119
        %v1142 = vadd.f32 %v1075, %v1122
        %v1143 = vadd.f32 %v1076, %v1125
        %v1144 = vadd.f32 %v1077, %v1128
        %v1145 = vadd.f32 %v1078, %v1131
        %s1146 = scalar_lea.vmem [#allocation2], 48
        %v1147 = vld [vmem:[%s1146] sm:$0xff]
        %v1148 = vld [vmem:[%s1146 + $0x8] sm:$0xff]
        %v1149 = vld [vmem:[%s1146 + $0x10] sm:$0xff]
        %v1150 = vld [vmem:[%s1146 + $0x18] sm:$0xff]
        %v1151 = vld [vmem:[%s1146 + $0x20] sm:$0xff]
        %v1152 = vld [vmem:[%s1146 + $0x28] sm:$0xff]
        %v1153 = vld [vmem:[%s1146 + $0x30] sm:$0xff]
        %v1154 = vld [vmem:[%s1146 + $0x38] sm:$0xff]
        %v1155 = vld [vmem:[%s1146 + $0x40] sm:$0xff]
        %v1156 = vld [vmem:[%s1146 + $0x48] sm:$0xff]
        %v1157 = vld [vmem:[%s1146 + $0x50] sm:$0xff]
        %v1158 = vld [vmem:[%s1146 + $0x58] sm:$0xff]
        %v1159 = vld [vmem:[%s1146 + $0x60] sm:$0xff]
        %v1160 = vld [vmem:[%s1146 + $0x68] sm:$0xff]
        %v1161 = vlaneseq
        %v1162 = vshrl.u32 %v1161, 7
        %v1163 = vsub.s32 0, %v1162
        %v1164 = vrot.slane %v324, %v1163
        %v1165 = vmul.f32 %v1147, %v1164
        %v1166 = vmul.f32 %v1149, %v1164
        %v1167 = vmul.f32 %v1151, %v1164
        %v1168 = vmul.f32 %v1153, %v1164
        %v1169 = vmul.f32 %v1155, %v1164
        %v1170 = vmul.f32 %v1157, %v1164
        %v1171 = vmul.f32 %v1159, %v1164
        %v1172 = vadd.f32 %v1139, %v1165
        %v1173 = vadd.f32 %v1140, %v1166
        %v1174 = vadd.f32 %v1141, %v1167
        %v1175 = vadd.f32 %v1142, %v1168
        %v1176 = vadd.f32 %v1143, %v1169
        %v1177 = vadd.f32 %v1144, %v1170
        %v1178 = vadd.f32 %v1145, %v1171
        %v1179 = vlaneseq
        %v1180 = vshrl.u32 %v1179, 7
        %v1181 = vsub.s32 1, %v1180
        %v1182 = vrot.slane %v324, %v1181
        %v1183 = vmul.f32 %v1147, %v1182
        %v1184 = vmul.f32 %v1149, %v1182
        %v1185 = vmul.f32 %v1151, %v1182
        %v1186 = vmul.f32 %v1153, %v1182
        %v1187 = vmul.f32 %v1155, %v1182
        %v1188 = vmul.f32 %v1157, %v1182
        %v1189 = vmul.f32 %v1159, %v1182
        %v1197 = vrot.slane %v1183, 1
        %v1198 = vrot.slane %v1184, 1
        %v1199 = vrot.slane %v1185, 1
        %v1200 = vrot.slane %v1186, 1
        %v1201 = vrot.slane %v1187, 1
        %v1202 = vrot.slane %v1188, 1
        %v1203 = vrot.slane %v1189, 1
        %v1211 = vadd.f32 %v1172, %v1197
        %v1212 = vadd.f32 %v1173, %v1198
        %v1213 = vadd.f32 %v1174, %v1199
        %v1214 = vadd.f32 %v1175, %v1200
        %v1215 = vadd.f32 %v1176, %v1201
        %v1216 = vadd.f32 %v1177, %v1202
        %v1217 = vadd.f32 %v1178, %v1203
        %v1218 = vlaneseq
        %v1219 = vshrl.u32 %v1218, 7
        %v1220 = vsub.s32 2, %v1219
        %v1221 = vrot.slane %v324, %v1220
        %v1222 = vmul.f32 %v1147, %v1221
        %v1223 = vmul.f32 %v1148, %v1221
        %v1224 = vmul.f32 %v1149, %v1221
        %v1225 = vmul.f32 %v1150, %v1221
        %v1226 = vmul.f32 %v1151, %v1221
        %v1227 = vmul.f32 %v1152, %v1221
        %v1228 = vmul.f32 %v1153, %v1221
        %v1229 = vmul.f32 %v1154, %v1221
        %v1230 = vmul.f32 %v1155, %v1221
        %v1231 = vmul.f32 %v1156, %v1221
        %v1232 = vmul.f32 %v1157, %v1221
        %v1233 = vmul.f32 %v1158, %v1221
        %v1234 = vmul.f32 %v1159, %v1221
        %v1235 = vmul.f32 %v1160, %v1221
        %v1250 = vrot.slane %v1222, 2
        %v1251 = vrot.slane %v1223, 2
        %v1252 = vsel %vm429, %v1250, %v1251
        %v1253 = vrot.slane %v1224, 2
        %v1254 = vrot.slane %v1225, 2
        %v1255 = vsel %vm429, %v1253, %v1254
        %v1256 = vrot.slane %v1226, 2
        %v1257 = vrot.slane %v1227, 2
        %v1258 = vsel %vm429, %v1256, %v1257
        %v1259 = vrot.slane %v1228, 2
        %v1260 = vrot.slane %v1229, 2
        %v1261 = vsel %vm429, %v1259, %v1260
        %v1262 = vrot.slane %v1230, 2
        %v1263 = vrot.slane %v1231, 2
        %v1264 = vsel %vm429, %v1262, %v1263
        %v1265 = vrot.slane %v1232, 2
        %v1266 = vrot.slane %v1233, 2
        %v1267 = vsel %vm429, %v1265, %v1266
        %v1268 = vrot.slane %v1234, 2
        %v1269 = vrot.slane %v1235, 2
        %v1270 = vsel %vm429, %v1268, %v1269
        %v1278 = vadd.f32 %v1211, %v1252
        %v1279 = vadd.f32 %v1212, %v1255
        %v1280 = vadd.f32 %v1213, %v1258
        %v1281 = vadd.f32 %v1214, %v1261
        %v1282 = vadd.f32 %v1215, %v1264
        %v1283 = vadd.f32 %v1216, %v1267
        %v1284 = vadd.f32 %v1217, %v1270
        %v1285 = vlaneseq
        %v1286 = vshrl.u32 %v1285, 7
        %v1287 = vsub.s32 3, %v1286
        %v1288 = vrot.slane %v324, %v1287
        %v1289 = vmul.f32 %v1147, %v1288
        %v1290 = vmul.f32 %v1148, %v1288
        %v1291 = vmul.f32 %v1149, %v1288
        %v1292 = vmul.f32 %v1150, %v1288
        %v1293 = vmul.f32 %v1151, %v1288
        %v1294 = vmul.f32 %v1152, %v1288
        %v1295 = vmul.f32 %v1153, %v1288
        %v1296 = vmul.f32 %v1154, %v1288
        %v1297 = vmul.f32 %v1155, %v1288
        %v1298 = vmul.f32 %v1156, %v1288
        %v1299 = vmul.f32 %v1157, %v1288
        %v1300 = vmul.f32 %v1158, %v1288
        %v1301 = vmul.f32 %v1159, %v1288
        %v1302 = vmul.f32 %v1160, %v1288
        %v1317 = vrot.slane %v1289, 3
        %v1318 = vrot.slane %v1290, 3
        %v1319 = vsel %vm497, %v1317, %v1318
        %v1320 = vrot.slane %v1291, 3
        %v1321 = vrot.slane %v1292, 3
        %v1322 = vsel %vm497, %v1320, %v1321
        %v1323 = vrot.slane %v1293, 3
        %v1324 = vrot.slane %v1294, 3
        %v1325 = vsel %vm497, %v1323, %v1324
        %v1326 = vrot.slane %v1295, 3
        %v1327 = vrot.slane %v1296, 3
        %v1328 = vsel %vm497, %v1326, %v1327
        %v1329 = vrot.slane %v1297, 3
        %v1330 = vrot.slane %v1298, 3
        %v1331 = vsel %vm497, %v1329, %v1330
        %v1332 = vrot.slane %v1299, 3
        %v1333 = vrot.slane %v1300, 3
        %v1334 = vsel %vm497, %v1332, %v1333
        %v1335 = vrot.slane %v1301, 3
        %v1336 = vrot.slane %v1302, 3
        %v1337 = vsel %vm497, %v1335, %v1336
        %v1345 = vadd.f32 %v1278, %v1319
        %v1346 = vadd.f32 %v1279, %v1322
        %v1347 = vadd.f32 %v1280, %v1325
        %v1348 = vadd.f32 %v1281, %v1328
        %v1349 = vadd.f32 %v1282, %v1331
        %v1350 = vadd.f32 %v1283, %v1334
        %v1351 = vadd.f32 %v1284, %v1337
        %v1352 = vlaneseq
        %v1353 = vshrl.u32 %v1352, 7
        %v1354 = vsub.s32 4, %v1353
        %v1355 = vrot.slane %v324, %v1354
        %v1356 = vmul.f32 %v1147, %v1355
        %v1357 = vmul.f32 %v1148, %v1355
        %v1358 = vmul.f32 %v1149, %v1355
        %v1359 = vmul.f32 %v1150, %v1355
        %v1360 = vmul.f32 %v1151, %v1355
        %v1361 = vmul.f32 %v1152, %v1355
        %v1362 = vmul.f32 %v1153, %v1355
        %v1363 = vmul.f32 %v1154, %v1355
        %v1364 = vmul.f32 %v1155, %v1355
        %v1365 = vmul.f32 %v1156, %v1355
        %v1366 = vmul.f32 %v1157, %v1355
        %v1367 = vmul.f32 %v1158, %v1355
        %v1368 = vmul.f32 %v1159, %v1355
        %v1369 = vmul.f32 %v1160, %v1355
        %v1384 = vrot.slane %v1356, 4
        %v1385 = vrot.slane %v1357, 4
        %v1386 = vsel %vm565, %v1384, %v1385
        %v1387 = vrot.slane %v1358, 4
        %v1388 = vrot.slane %v1359, 4
        %v1389 = vsel %vm565, %v1387, %v1388
        %v1390 = vrot.slane %v1360, 4
        %v1391 = vrot.slane %v1361, 4
        %v1392 = vsel %vm565, %v1390, %v1391
        %v1393 = vrot.slane %v1362, 4
        %v1394 = vrot.slane %v1363, 4
        %v1395 = vsel %vm565, %v1393, %v1394
        %v1396 = vrot.slane %v1364, 4
        %v1397 = vrot.slane %v1365, 4
        %v1398 = vsel %vm565, %v1396, %v1397
        %v1399 = vrot.slane %v1366, 4
        %v1400 = vrot.slane %v1367, 4
        %v1401 = vsel %vm565, %v1399, %v1400
        %v1402 = vrot.slane %v1368, 4
        %v1403 = vrot.slane %v1369, 4
        %v1404 = vsel %vm565, %v1402, %v1403
        %v1412 = vadd.f32 %v1345, %v1386
        %v1413 = vadd.f32 %v1346, %v1389
        %v1414 = vadd.f32 %v1347, %v1392
        %v1415 = vadd.f32 %v1348, %v1395
        %v1416 = vadd.f32 %v1349, %v1398
        %v1417 = vadd.f32 %v1350, %v1401
        %v1418 = vadd.f32 %v1351, %v1404
        %s1419 = scalar_lea.vmem [#allocation2], 64
        %v1420 = vld [vmem:[%s1419] sm:$0xff]
        %v1421 = vld [vmem:[%s1419 + $0x8] sm:$0xff]
        %v1422 = vld [vmem:[%s1419 + $0x10] sm:$0xff]
        %v1423 = vld [vmem:[%s1419 + $0x18] sm:$0xff]
        %v1424 = vld [vmem:[%s1419 + $0x20] sm:$0xff]
        %v1425 = vld [vmem:[%s1419 + $0x28] sm:$0xff]
        %v1426 = vld [vmem:[%s1419 + $0x30] sm:$0xff]
        %v1427 = vld [vmem:[%s1419 + $0x38] sm:$0xff]
        %v1428 = vld [vmem:[%s1419 + $0x40] sm:$0xff]
        %v1429 = vld [vmem:[%s1419 + $0x48] sm:$0xff]
        %v1430 = vld [vmem:[%s1419 + $0x50] sm:$0xff]
        %v1431 = vld [vmem:[%s1419 + $0x58] sm:$0xff]
        %v1432 = vld [vmem:[%s1419 + $0x60] sm:$0xff]
        %v1433 = vld [vmem:[%s1419 + $0x68] sm:$0xff]
        %v1434 = vlaneseq
        %v1435 = vshrl.u32 %v1434, 7
        %v1436 = vsub.s32 0, %v1435
        %v1437 = vrot.slane %v325, %v1436
        %v1438 = vmul.f32 %v1420, %v1437
        %v1439 = vmul.f32 %v1422, %v1437
        %v1440 = vmul.f32 %v1424, %v1437
        %v1441 = vmul.f32 %v1426, %v1437
        %v1442 = vmul.f32 %v1428, %v1437
        %v1443 = vmul.f32 %v1430, %v1437
        %v1444 = vmul.f32 %v1432, %v1437
        %v1445 = vadd.f32 %v1412, %v1438
        %v1446 = vadd.f32 %v1413, %v1439
        %v1447 = vadd.f32 %v1414, %v1440
        %v1448 = vadd.f32 %v1415, %v1441
        %v1449 = vadd.f32 %v1416, %v1442
        %v1450 = vadd.f32 %v1417, %v1443
        %v1451 = vadd.f32 %v1418, %v1444
        %v1452 = vlaneseq
        %v1453 = vshrl.u32 %v1452, 7
        %v1454 = vsub.s32 1, %v1453
        %v1455 = vrot.slane %v325, %v1454
        %v1456 = vmul.f32 %v1420, %v1455
        %v1457 = vmul.f32 %v1422, %v1455
        %v1458 = vmul.f32 %v1424, %v1455
        %v1459 = vmul.f32 %v1426, %v1455
        %v1460 = vmul.f32 %v1428, %v1455
        %v1461 = vmul.f32 %v1430, %v1455
        %v1462 = vmul.f32 %v1432, %v1455
        %v1470 = vrot.slane %v1456, 1
        %v1471 = vrot.slane %v1457, 1
        %v1472 = vrot.slane %v1458, 1
        %v1473 = vrot.slane %v1459, 1
        %v1474 = vrot.slane %v1460, 1
        %v1475 = vrot.slane %v1461, 1
        %v1476 = vrot.slane %v1462, 1
        %v1484 = vadd.f32 %v1445, %v1470
        %v1485 = vadd.f32 %v1446, %v1471
        %v1486 = vadd.f32 %v1447, %v1472
        %v1487 = vadd.f32 %v1448, %v1473
        %v1488 = vadd.f32 %v1449, %v1474
        %v1489 = vadd.f32 %v1450, %v1475
        %v1490 = vadd.f32 %v1451, %v1476
        %v1491 = vlaneseq
        %v1492 = vshrl.u32 %v1491, 7
        %v1493 = vsub.s32 2, %v1492
        %v1494 = vrot.slane %v325, %v1493
        %v1495 = vmul.f32 %v1420, %v1494
        %v1496 = vmul.f32 %v1421, %v1494
        %v1497 = vmul.f32 %v1422, %v1494
        %v1498 = vmul.f32 %v1423, %v1494
        %v1499 = vmul.f32 %v1424, %v1494
        %v1500 = vmul.f32 %v1425, %v1494
        %v1501 = vmul.f32 %v1426, %v1494
        %v1502 = vmul.f32 %v1427, %v1494
        %v1503 = vmul.f32 %v1428, %v1494
        %v1504 = vmul.f32 %v1429, %v1494
        %v1505 = vmul.f32 %v1430, %v1494
        %v1506 = vmul.f32 %v1431, %v1494
        %v1507 = vmul.f32 %v1432, %v1494
        %v1508 = vmul.f32 %v1433, %v1494
        %v1523 = vrot.slane %v1495, 2
        %v1524 = vrot.slane %v1496, 2
        %v1525 = vsel %vm429, %v1523, %v1524
        %v1526 = vrot.slane %v1497, 2
        %v1527 = vrot.slane %v1498, 2
        %v1528 = vsel %vm429, %v1526, %v1527
        %v1529 = vrot.slane %v1499, 2
        %v1530 = vrot.slane %v1500, 2
        %v1531 = vsel %vm429, %v1529, %v1530
        %v1532 = vrot.slane %v1501, 2
        %v1533 = vrot.slane %v1502, 2
        %v1534 = vsel %vm429, %v1532, %v1533
        %v1535 = vrot.slane %v1503, 2
        %v1536 = vrot.slane %v1504, 2
        %v1537 = vsel %vm429, %v1535, %v1536
        %v1538 = vrot.slane %v1505, 2
        %v1539 = vrot.slane %v1506, 2
        %v1540 = vsel %vm429, %v1538, %v1539
        %v1541 = vrot.slane %v1507, 2
        %v1542 = vrot.slane %v1508, 2
        %v1543 = vsel %vm429, %v1541, %v1542
        %v1551 = vadd.f32 %v1484, %v1525
        %v1552 = vadd.f32 %v1485, %v1528
        %v1553 = vadd.f32 %v1486, %v1531
        %v1554 = vadd.f32 %v1487, %v1534
        %v1555 = vadd.f32 %v1488, %v1537
        %v1556 = vadd.f32 %v1489, %v1540
        %v1557 = vadd.f32 %v1490, %v1543
        %v1558 = vlaneseq
        %v1559 = vshrl.u32 %v1558, 7
        %v1560 = vsub.s32 3, %v1559
        %v1561 = vrot.slane %v325, %v1560
        %v1562 = vmul.f32 %v1420, %v1561
        %v1563 = vmul.f32 %v1421, %v1561
        %v1564 = vmul.f32 %v1422, %v1561
        %v1565 = vmul.f32 %v1423, %v1561
        %v1566 = vmul.f32 %v1424, %v1561
        %v1567 = vmul.f32 %v1425, %v1561
        %v1568 = vmul.f32 %v1426, %v1561
        %v1569 = vmul.f32 %v1427, %v1561
        %v1570 = vmul.f32 %v1428, %v1561
        %v1571 = vmul.f32 %v1429, %v1561
        %v1572 = vmul.f32 %v1430, %v1561
        %v1573 = vmul.f32 %v1431, %v1561
        %v1574 = vmul.f32 %v1432, %v1561
        %v1575 = vmul.f32 %v1433, %v1561
        %v1590 = vrot.slane %v1562, 3
        %v1591 = vrot.slane %v1563, 3
        %v1592 = vsel %vm497, %v1590, %v1591
        %v1593 = vrot.slane %v1564, 3
        %v1594 = vrot.slane %v1565, 3
        %v1595 = vsel %vm497, %v1593, %v1594
        %v1596 = vrot.slane %v1566, 3
        %v1597 = vrot.slane %v1567, 3
        %v1598 = vsel %vm497, %v1596, %v1597
        %v1599 = vrot.slane %v1568, 3
        %v1600 = vrot.slane %v1569, 3
        %v1601 = vsel %vm497, %v1599, %v1600
        %v1602 = vrot.slane %v1570, 3
        %v1603 = vrot.slane %v1571, 3
        %v1604 = vsel %vm497, %v1602, %v1603
        %v1605 = vrot.slane %v1572, 3
        %v1606 = vrot.slane %v1573, 3
        %v1607 = vsel %vm497, %v1605, %v1606
        %v1608 = vrot.slane %v1574, 3
        %v1609 = vrot.slane %v1575, 3
        %v1610 = vsel %vm497, %v1608, %v1609
        %v1618 = vadd.f32 %v1551, %v1592
        %v1619 = vadd.f32 %v1552, %v1595
        %v1620 = vadd.f32 %v1553, %v1598
        %v1621 = vadd.f32 %v1554, %v1601
        %v1622 = vadd.f32 %v1555, %v1604
        %v1623 = vadd.f32 %v1556, %v1607
        %v1624 = vadd.f32 %v1557, %v1610
        %v1625 = vlaneseq
        %v1626 = vshrl.u32 %v1625, 7
        %v1627 = vsub.s32 4, %v1626
        %v1628 = vrot.slane %v325, %v1627
        %v1629 = vmul.f32 %v1420, %v1628
        %v1630 = vmul.f32 %v1421, %v1628
        %v1631 = vmul.f32 %v1422, %v1628
        %v1632 = vmul.f32 %v1423, %v1628
        %v1633 = vmul.f32 %v1424, %v1628
        %v1634 = vmul.f32 %v1425, %v1628
        %v1635 = vmul.f32 %v1426, %v1628
        %v1636 = vmul.f32 %v1427, %v1628
        %v1637 = vmul.f32 %v1428, %v1628
        %v1638 = vmul.f32 %v1429, %v1628
        %v1639 = vmul.f32 %v1430, %v1628
        %v1640 = vmul.f32 %v1431, %v1628
        %v1641 = vmul.f32 %v1432, %v1628
        %v1642 = vmul.f32 %v1433, %v1628
        %v1657 = vrot.slane %v1629, 4
        %v1658 = vrot.slane %v1630, 4
        %v1659 = vsel %vm565, %v1657, %v1658
        %v1660 = vrot.slane %v1631, 4
        %v1661 = vrot.slane %v1632, 4
        %v1662 = vsel %vm565, %v1660, %v1661
        %v1663 = vrot.slane %v1633, 4
        %v1664 = vrot.slane %v1634, 4
        %v1665 = vsel %vm565, %v1663, %v1664
        %v1666 = vrot.slane %v1635, 4
        %v1667 = vrot.slane %v1636, 4
        %v1668 = vsel %vm565, %v1666, %v1667
        %v1669 = vrot.slane %v1637, 4
        %v1670 = vrot.slane %v1638, 4
        %v1671 = vsel %vm565, %v1669, %v1670
        %v1672 = vrot.slane %v1639, 4
        %v1673 = vrot.slane %v1640, 4
        %v1674 = vsel %vm565, %v1672, %v1673
        %v1675 = vrot.slane %v1641, 4
        %v1676 = vrot.slane %v1642, 4
        %v1677 = vsel %vm565, %v1675, %v1676
        %v1685 = vadd.f32 %v1618, %v1659
        %v1686 = vadd.f32 %v1619, %v1662
        %v1687 = vadd.f32 %v1620, %v1665
        %v1688 = vadd.f32 %v1621, %v1668
        %v1689 = vadd.f32 %v1622, %v1671
        %v1690 = vadd.f32 %v1623, %v1674
        %v1691 = vadd.f32 %v1624, %v1677
        %1692 = vst [vmem:[%s283] sm:$0x7f] %v1685
        %1693 = vst [vmem:[%s283 + $0x8] sm:$0x7f] %v1686
        %1694 = vst [vmem:[%s283 + $0x10] sm:$0x7f] %v1687
        %1695 = vst [vmem:[%s283 + $0x18] sm:$0x7f] %v1688
        %1696 = vst [vmem:[%s283 + $0x20] sm:$0x7f] %v1689
        %1697 = vst [vmem:[%s283 + $0x28] sm:$0x7f] %v1690
        %1698 = vst [vmem:[%s283 + $0x30] sm:$0x7f] %v1691
        %s1699 = sand.u32 %s89, 1
        %s1700 = sand.u32 %s89, 1
        %s1701 = smul.addr %s1700, 56
        %s1702 = scalar_lea.vmem [#allocation5], %s1701
        // Predicated region
        $region105: #{depthwise_conv2d_pallas.1} parent=95 // pred_check
          %p1703 = pneg %p99
        $region106: #{depthwise_conv2d_pallas.1} parent=95 // pred_check_branch
          %1705 = sbr.rel (%p1703) target = $region108
        $region107: #{depthwise_conv2d_pallas.1} parent=95 // pred_region
          %s1706 = smul.addr %s17, 21
          %s1707 = sadd.s32 %s18, %s1706
          %s1708 = smul.addr %s1707, 8
          %s1709 = scalar_lea.vmem %s2, %s1708
          // Predicated region
          $region109: #{depthwise_conv2d_pallas.1} parent=107 // pred_check
            _
          $region110: #{depthwise_conv2d_pallas.1} parent=107 // pred_check_branch
            %1711 = sbr.rel (0) target = $region112
          $region111: #{depthwise_conv2d_pallas.1} parent=107 // pred_region
            // Predicated region
            $region113: #{depthwise_conv2d_pallas.1} parent=111 // pred_check
              _
            $region114: #{depthwise_conv2d_pallas.1} parent=111 // pred_check_branch
              %1713 = sbr.rel (0) target = $region116
            $region115: #{depthwise_conv2d_pallas.1} parent=111 // pred_region
              // Predicated region
              $region128: #{depthwise_conv2d_pallas.1} parent=115 // pred_check
                _
              $region129: #{depthwise_conv2d_pallas.1} parent=115 // pred_check_branch
                %1740 = sbr.rel (0) target = $region131
              $region130: #{depthwise_conv2d_pallas.1} parent=115 // pred_region
                loop: start=0, step=1, limit=1
                $region132: #{depthwise_conv2d_pallas.1} parent=130 // loop_pre_header
                  _
                $region133: #{depthwise_conv2d_pallas.1} parent=130 // loop_header
                  %s1742 = sphi 0, %s1746
                  %p1743 = scmp.ge.s32.totalorder %s1742, 1
                  %s1747 = sphi %s1702, %s1702
                  %s1748 = sphi %s1709, %s1709
                $region134: #{depthwise_conv2d_pallas.1} parent=130 // loop_header_branch
                  %1745 = sbr.rel (%p1743) target = $region138
                $region135: #{depthwise_conv2d_pallas.1} parent=130 // loop_body
                  %v1749 = vld [vmem:[%s1747] sm:$0xff]
                  %1750 = vst [vmem:[%s1748] sm:$0xff] %v1749
                  %v1751 = vld [vmem:[%s1747 + $0x8] sm:$0xff]
                  %1752 = vst [vmem:[%s1748 + $0x18] sm:$0xff] %v1751
                  %v1753 = vld [vmem:[%s1747 + $0x10] sm:$0xff]
                  %1754 = vst [vmem:[%s1748 + $0x30] sm:$0xff] %v1753
                  %v1755 = vld [vmem:[%s1747 + $0x18] sm:$0xff]
                  %1756 = vst [vmem:[%s1748 + $0x48] sm:$0xff] %v1755
                  %v1757 = vld [vmem:[%s1747 + $0x20] sm:$0xff]
                  %1758 = vst [vmem:[%s1748 + $0x60] sm:$0xff] %v1757
                  %v1759 = vld [vmem:[%s1747 + $0x28] sm:$0xff]
                  %1760 = vst [vmem:[%s1748 + $0x78] sm:$0xff] %v1759
                  %v1761 = vld [vmem:[%s1747 + $0x30] sm:$0xff]
                  %1762 = vst [vmem:[%s1748 + $0x90] sm:$0xff] %v1761
                $region136: #{depthwise_conv2d_pallas.1} parent=130 // loop_footer
                  %s1746 = sadd.s32 1, %s1742
                $region137: #{depthwise_conv2d_pallas.1} parent=130 // loop_footer_branch
                  %1741 = sbr.rel target = $region133
                $region138: #{depthwise_conv2d_pallas.1} parent=130 // loop_exit
                  _
              $region131: #{depthwise_conv2d_pallas.1} parent=115 // pred_fallthru
                _
              // Predicated region
              $region139: #{depthwise_conv2d_pallas.1} parent=115 // pred_check
                _
              $region140: #{depthwise_conv2d_pallas.1} parent=115 // pred_check_branch
                %1764 = sbr.rel target = $region142
              $region141: #{depthwise_conv2d_pallas.1} parent=115 // pred_region
                _
              $region142: #{depthwise_conv2d_pallas.1} parent=115 // pred_fallthru
                _
            $region116: #{depthwise_conv2d_pallas.1} parent=111 // pred_fallthru
              _
            // Predicated region
            $region117: #{depthwise_conv2d_pallas.1} parent=111 // pred_check
              _
            $region118: #{depthwise_conv2d_pallas.1} parent=111 // pred_check_branch
              %1715 = sbr.rel target = $region120
            $region119: #{depthwise_conv2d_pallas.1} parent=111 // pred_region
              loop: start=0, step=1, limit=1
              $region121: #{depthwise_conv2d_pallas.1} parent=119 // loop_pre_header
                _
              $region122: #{depthwise_conv2d_pallas.1} parent=119 // loop_header
                %s1718 = sphi 0, %s1722
                %p1719 = scmp.ge.s32.totalorder %s1718, 1
                %s1723 = sphi %s1702, %s1702
                %s1724 = sphi %s1709, %s1709
              $region123: #{depthwise_conv2d_pallas.1} parent=119 // loop_header_branch
                %1721 = sbr.rel (%p1719) target = $region127
              $region124: #{depthwise_conv2d_pallas.1} parent=119 // loop_body
                %v1725 = vld [vmem:[%s1723] sm:$0xff]
                %1726 = vst [vmem:[%s1724] sm:$0xff] %v1725
                %v1727 = vld [vmem:[%s1723 + $0x8] sm:$0xff]
                %1728 = vst [vmem:[%s1724 + $0x18] sm:$0xff] %v1727
                %v1729 = vld [vmem:[%s1723 + $0x10] sm:$0xff]
                %1730 = vst [vmem:[%s1724 + $0x30] sm:$0xff] %v1729
                %v1731 = vld [vmem:[%s1723 + $0x18] sm:$0xff]
                %1732 = vst [vmem:[%s1724 + $0x48] sm:$0xff] %v1731
                %v1733 = vld [vmem:[%s1723 + $0x20] sm:$0xff]
                %1734 = vst [vmem:[%s1724 + $0x60] sm:$0xff] %v1733
                %v1735 = vld [vmem:[%s1723 + $0x28] sm:$0xff]
                %1736 = vst [vmem:[%s1724 + $0x78] sm:$0xff] %v1735
                %v1737 = vld [vmem:[%s1723 + $0x30] sm:$0xff]
                %1738 = vst [vmem:[%s1724 + $0x90] sm:$0xff] %v1737
              $region125: #{depthwise_conv2d_pallas.1} parent=119 // loop_footer
                %s1722 = sadd.s32 1, %s1718
              $region126: #{depthwise_conv2d_pallas.1} parent=119 // loop_footer_branch
                %1717 = sbr.rel target = $region122
              $region127: #{depthwise_conv2d_pallas.1} parent=119 // loop_exit
                _
            $region120: #{depthwise_conv2d_pallas.1} parent=111 // pred_fallthru
              _
          $region112: #{depthwise_conv2d_pallas.1} parent=107 // pred_fallthru
            _
          %1765 = vnop
        $region108: #{depthwise_conv2d_pallas.1} parent=95 // pred_fallthru
          _
      $region96: #{depthwise_conv2d_pallas.1} parent=5 // pred_fallthru
        _
      %p1766 = scmp.le.s32.totalorder 2, %s8
      // Predicated region
      $region143: #{depthwise_conv2d_pallas.1} parent=5 // pred_check
        %p1767 = pneg %p1766
      $region144: #{depthwise_conv2d_pallas.1} parent=5 // pred_check_branch
        %1769 = sbr.rel (%p1767) target = $region146
      $region145: #{depthwise_conv2d_pallas.1} parent=5 // pred_region
        %s1770 = ssub.s32 %s8, 2
        // Predicated region
        $region147: #{depthwise_conv2d_pallas.1} parent=145 // pred_check
          %p1771 = pneg %p105
        $region148: #{depthwise_conv2d_pallas.1} parent=145 // pred_check_branch
          %1773 = sbr.rel (%p1771) target = $region150
        $region149: #{depthwise_conv2d_pallas.1} parent=145 // pred_region
          %s1774 = sand.u32 %s90, 1
          %s1775 = sand.u32 %s90, 1
          %s1776 = smul.addr %s1775, 56
          %s1777 = scalar_lea.vmem [#allocation5], %s1776
        $region150: #{depthwise_conv2d_pallas.1} parent=145 // pred_fallthru
          _
      $region146: #{depthwise_conv2d_pallas.1} parent=5 // pred_fallthru
        _
    $region6: #{depthwise_conv2d_pallas.1} parent=1 // loop_footer
      %s12 = sadd.s32 1, %s8
    $region7: #{depthwise_conv2d_pallas.1} parent=1 // loop_footer_branch
      %7 = sbr.rel target = $region3
    $region8: #{depthwise_conv2d_pallas.1} parent=1 // loop_exit
      _

</llo_original>
